<compile_context>
chip_gen: v7x
topology: tpu7x:2x2x1
jax: 0.10.0
libtpu: 0.0.40
codegen_flags: <defaults>
</compile_context>

<pallas_src>
import jax
import jax.numpy as jnp
from jax import lax
from jax.experimental import pallas as pl
from jax.experimental.pallas import tpu as pltpu


# 2x2 cell shifts used by both conv lowerings
_CELL_SHIFTS = ((0, 0), (0, 1), (1, 0), (1, 1))

# Transposed-conv subpixel taps: (subpixel s = 2*sy+sx, e-shift (di, dj), weight tap (ky, kx))
# derived from: out[2m+sy, 2n+sx] += e[m+di, n+dj] @ W[:, :, ky, kx]  (stride 2, pad 1, out_pad 1)
_UP_TAPS = (
    (0, 0, 0, 1, 1),
    (1, 0, 1, 1, 0),
    (1, 0, 0, 1, 2),
    (2, 1, 0, 0, 1),
    (2, 0, 0, 2, 1),
    (3, 1, 1, 0, 0),
    (3, 1, 0, 0, 2),
    (3, 0, 1, 2, 0),
    (3, 0, 0, 2, 2),
)


def seg_v3_block_innermost(x_nchw, w_down, w_up, gamma, beta):
    """Innermost SegV3Block forward.

    x_nchw : (N, Cin, H, W)              PyTorch NCHW input
    w_down : (inner_nc, Cin, 3, 3)       Conv2d weight (OIHW), no bias
    w_up   : (inner_nc, outer_nc, 3, 3)  ConvTranspose2d weight, no bias
    gamma, beta : (outer_nc,)            BatchNorm2d affine params (training-mode stats)
    returns (N, Cin + outer_nc, H, W)
    """
    N, Cin, H, W = x_nchw.shape
    inner = w_down.shape[0]
    outer = w_up.shape[1]
    assert H % 2 == 0 and W % 2 == 0
    Ho, Wo = H // 2, W // 2
    HW, HWq = H * W, Ho * Wo
    Ctot = Cin + outer
    count = float(N * HW)
    bf16 = jnp.bfloat16
    f32 = jnp.float32

    # ---------------- glue: one cheap XLA prep pass over x ----------------
    # ReLU folded here (review: no in-kernel relu on x); pad + 2x2 space-to-depth;
    # the 4 shifted cell windows are concatenated along channels so the down-conv
    # becomes a single in-kernel matmul.
    x_nhwc = jnp.transpose(jnp.maximum(x_nchw, 0.0), (0, 2, 3, 1))
    xp = jnp.pad(x_nhwc, ((0, 0), (1, 1), (1, 1), (0, 0)))                   # (N, H+2, W+2, Cin)
    xs2d = (xp.reshape(N, Ho + 1, 2, Wo + 1, 2, Cin)
              .transpose(0, 1, 3, 2, 4, 5)
              .reshape(N, Ho + 1, Wo + 1, 4 * Cin))                          # cell (i,j) = 2x2 pixels
    xcat = jnp.concatenate(
        [xs2d[:, di:di + Ho, dj:dj + Wo, :] for (di, dj) in _CELL_SHIFTS],
        axis=-1).astype(bf16)                                                # (N, Ho, Wo, 16*Cin)
    xflat = x_nchw.reshape(N, Cin, HW)                                       # skip connection (f32, exact)

    # ---------------- weight packing (once per call) ----------------
    def cell_block(di, dj):
        rows = []
        for dy in (0, 1):
            for dx in (0, 1):
                kh, kw = 2 * di + dy, 2 * dj + dx
                if kh < 3 and kw < 3:
                    rows.append(w_down[:, :, kh, kw].T)                      # (Cin, inner)
                else:
                    rows.append(jnp.zeros((Cin, inner), w_down.dtype))
        return jnp.concatenate(rows, axis=0)                                 # (4*Cin, inner)

    wd_full = jnp.concatenate(
        [cell_block(di, dj) for (di, dj) in _CELL_SHIFTS], axis=0).astype(bf16)   # (16*Cin, inner)

    tap_by_shift = {}
    for (s, di, dj, ky, kx) in _UP_TAPS:
        tap_by_shift.setdefault((di, dj), []).append((s, ky, kx))
    wu_blocks = []
    for (di, dj) in _CELL_SHIFTS:
        cols = [jnp.zeros((inner, outer), w_up.dtype) for _ in range(4)]
        for (s, ky, kx) in tap_by_shift[(di, dj)]:
            cols[s] = w_up[:, :, ky, kx]
        wu_blocks.append(jnp.concatenate(cols, axis=1))                      # (inner, 4*outer)
    wu_g = jnp.stack(wu_blocks, axis=0).astype(bf16)                         # (4, inner, 4*outer)

    # subpixel -> row-major scatter matrices (0/1, f32 -> exact), one per subpixel
    q = jnp.arange(HWq)
    qi, qj = q // Wo, q % Wo
    scat_list = []
    for s in range(4):
        sy, sx = s // 2, s % 2
        f = (2 * qi + sy) * W + (2 * qj + sx)                                # (HWq,)
        scat_list.append((f[:, None] == jnp.arange(HW)[None, :]).astype(f32))
    scat = jnp.stack(scat_list, axis=0)                                      # (4, HWq, HW)

    gcol = gamma.reshape(outer, 1).astype(f32)
    bcol = beta.reshape(outer, 1).astype(f32)

    # ---------------- fused kernel (single grid step, whole batch) ----------------
    def kernel(xc_ref, xf_ref, wd_ref, wu_ref, sc_ref, g_ref, b_ref, o_ref):
        # relu(x) -> Conv2d(3x3, stride 2, pad 1): ONE bf16 MXU matmul (M = N*HWq)
        a = xc_ref[...].reshape(N * HWq, 16 * Cin)                           # bf16
        d = jnp.dot(a, wd_ref[...], preferred_element_type=jnp.float32)      # (N*HWq, inner) f32

        # relu -> ConvTranspose2d(3x3, stride 2, pad 1, out_pad 1): 4 per-shift matmuls
        e = jnp.maximum(d, 0.0).reshape(N, Ho, Wo, inner)                    # f32 elementwise
        ep = jnp.concatenate([e, jnp.zeros((N, 1, Wo, inner), jnp.float32)], axis=1)
        ep = jnp.concatenate([ep, jnp.zeros((N, Ho + 1, 1, inner), jnp.float32)], axis=2)
        ep = ep.astype(jnp.bfloat16)                                         # cast once, right before dots
        u = jnp.zeros((N * HWq, 4 * outer), jnp.float32)                     # columns = (subpixel s, channel)
        for cidx, (di, dj) in enumerate(_CELL_SHIFTS):
            eq = ep[:, di:di + Ho, dj:dj + Wo, :].reshape(N * HWq, inner)
            u = u + jnp.dot(eq, wu_ref[cidx], preferred_element_type=jnp.float32)

        # subpixel-blocked -> row-major reorder: lane-dense (outer, HW) per batch, all f32
        scm = [sc_ref[s] for s in range(4)]                                  # (HWq, HW) each
        t_raw = []
        for n in range(N):
            unt = u[n * HWq:(n + 1) * HWq, :].T                              # (4*outer, HWq)
            t = jnp.zeros((outer, HW), jnp.float32)
            for s in range(4):
                t = t + jnp.dot(unt[s * outer:(s + 1) * outer, :], scm[s],
                                preferred_element_type=jnp.float32)
            t_raw.append(t)                                                  # un-normalized ConvT output

        # BatchNorm2d (training-mode stats, centered two-pass variance, f32)
        inv_cnt = 1.0 / count
        mean = sum(jnp.sum(t, axis=1, keepdims=True) for t in t_raw) * inv_cnt       # (outer, 1)
        var = sum(jnp.sum((t - mean) ** 2, axis=1, keepdims=True) for t in t_raw) * inv_cnt
        scale = lax.rsqrt(var + 1e-5) * g_ref[...]
        shift = b_ref[...] - mean * scale

        # fused skip-connection concat + one full lane-dense store per batch element
        for n in range(N):
            o_ref[n] = jnp.concatenate([xf_ref[n], t_raw[n] * scale + shift], axis=0)

    def _zeros_map(rank):
        return lambda i: (0,) * rank

    grid_spec = pltpu.PrefetchScalarGridSpec(
        num_scalar_prefetch=0,
        grid=(1,),                                                           # single fused step
        in_specs=[
            pl.BlockSpec((N, Ho, Wo, 16 * Cin), _zeros_map(4)),
            pl.BlockSpec((N, Cin, HW), _zeros_map(3)),
            pl.BlockSpec((16 * Cin, inner), _zeros_map(2)),
            pl.BlockSpec((4, inner, 4 * outer), _zeros_map(3)),
            pl.BlockSpec((4, HWq, HW), _zeros_map(3)),
            pl.BlockSpec((outer, 1), _zeros_map(2)),
            pl.BlockSpec((outer, 1), _zeros_map(2)),
        ],
        out_specs=pl.BlockSpec((N, Ctot, HW), _zeros_map(3)),
    )

    out_flat = pl.pallas_call(
        kernel,
        out_shape=jax.ShapeDtypeStruct((N, Ctot, HW), jnp.float32),
        grid_spec=grid_spec,
        compiler_params=pltpu.CompilerParams(
            dimension_semantics=("arbitrary",),
            vmem_limit_bytes=32 * 1024 * 1024),                              # explicit, far above need
    )(xcat, xflat, wd_full, wu_g, scat, gcol, bcol)

    return out_flat.reshape(N, Ctot, H, W)                                   # free reshape to NCHW


# ----------------------------- reference (JAX, ~f32 exact) ------------------------------

def _reference(x_nchw, w_down, w_up_t, gamma, beta):
    hp = lax.Precision.HIGHEST
    dn = lax.conv_general_dilated(
        jnp.maximum(x_nchw, 0.0), w_down, (2, 2), ((1, 1), (1, 1)),
        dimension_numbers=('NCHW', 'OIHW', 'NCHW'), precision=hp)
    wc = jnp.transpose(w_up_t[:, :, ::-1, ::-1], (1, 0, 2, 3))
    up = lax.conv_general_dilated(
        jnp.maximum(dn, 0.0), wc, (1, 1), ((1, 2), (1, 2)),
        lhs_dilation=(2, 2), dimension_numbers=('NCHW', 'OIHW', 'NCHW'), precision=hp)
    mean = up.mean(axis=(0, 2, 3), keepdims=True)
    var = ((up - mean) ** 2).mean(axis=(0, 2, 3), keepdims=True)
    bn = (up - mean) / jnp.sqrt(var + 1e-5) * gamma.reshape(1, -1, 1, 1) \
         + beta.reshape(1, -1, 1, 1)
    return jnp.concatenate([x_nchw, bn], axis=1)


# ---------------------------------- main ------------------------------------

if __name__ == "__main__":
    key = jax.random.PRNGKey(0)
    k1, k2, k3, k4, k5 = jax.random.split(key, 5)

    N, outer_nc, inner_nc, H, W = 2, 4, 8, 16, 16
    input_nc = outer_nc  # input_nc defaults to outer_nc in the module

    x = jax.random.normal(k1, (N, input_nc, H, W), jnp.float32)
    w_down = jax.random.normal(k2, (inner_nc, input_nc, 3, 3), jnp.float32) * 0.1
    w_up = jax.random.normal(k3, (inner_nc, outer_nc, 3, 3), jnp.float32) * 0.1
    gamma = 1.0 + 0.1 * jax.random.normal(k4, (outer_nc,), jnp.float32)
    beta = 0.1 * jax.random.normal(k5, (outer_nc,), jnp.float32)

    out = jax.jit(seg_v3_block_innermost)(x, w_down, w_up, gamma, beta)
    out = jax.block_until_ready(out)

    assert out.shape == (N, input_nc + outer_nc, H, W), out.shape

    ref = _reference(x, w_down, w_up, gamma, beta)
    # skip-connection half is a straight f32 copy -> must match tightly
    if not jnp.allclose(out[:, :input_nc], x):
        raise AssertionError("skip-connection passthrough mismatch")
    # conv/BN half carries only bf16 MXU-operand rounding vs the f32-precision reference
    if not jnp.allclose(out, ref, atol=5e-2, rtol=5e-2):
        err = float(jnp.max(jnp.abs(out - ref)))
        raise AssertionError(f"Pallas SegV3Block output mismatch vs reference (max abs err {err})")

    print("KERNEL_OK")
</pallas_src>

<mosaic_0001>
module attributes {stable_mosaic.version = 11 : i64} {
  func.func @kernel(%arg0: i32, %arg1: memref<2x8x8x64xbf16, #tpu.memory_space<vmem>>, %arg2: memref<2x4x256xf32, #tpu.memory_space<vmem>>, %arg3: memref<64x8xbf16, #tpu.memory_space<vmem>>, %arg4: memref<4x8x16xbf16, #tpu.memory_space<vmem>>, %arg5: memref<4x64x256xf32, #tpu.memory_space<vmem>>, %arg6: memref<4x1xf32, #tpu.memory_space<vmem>>, %arg7: memref<4x1xf32, #tpu.memory_space<vmem>>, %arg8: memref<2x8x256xf32, #tpu.memory_space<vmem>>) attributes {dimension_semantics = [#tpu.dimension_semantics<arbitrary>], iteration_bounds = array<i64: 1>, scalar_prefetch = 0 : i64, scratch_operands = 0 : i64, tpu.core_type = #tpu.core_type<tc>, window_params = [{pipeline_mode = #tpu.pipeline_mode<synchronous>, transform_indices = @transform_0, window_bounds = array<i64: 2, 8, 8, 64>}, {pipeline_mode = #tpu.pipeline_mode<synchronous>, transform_indices = @transform_1, window_bounds = array<i64: 2, 4, 256>}, {pipeline_mode = #tpu.pipeline_mode<synchronous>, transform_indices = @transform_2, window_bounds = array<i64: 64, 8>}, {pipeline_mode = #tpu.pipeline_mode<synchronous>, transform_indices = @transform_3, window_bounds = array<i64: 4, 8, 16>}, {pipeline_mode = #tpu.pipeline_mode<synchronous>, transform_indices = @transform_4, window_bounds = array<i64: 4, 64, 256>}, {pipeline_mode = #tpu.pipeline_mode<synchronous>, transform_indices = @transform_5, window_bounds = array<i64: 4, 1>}, {pipeline_mode = #tpu.pipeline_mode<synchronous>, transform_indices = @transform_6, window_bounds = array<i64: 4, 1>}, {pipeline_mode = #tpu.pipeline_mode<synchronous>, transform_indices = @transform_7, window_bounds = array<i64: 2, 8, 256>}]} {
    %c0 = arith.constant 0 : index
    %c0_0 = arith.constant 0 : index
    %c0_1 = arith.constant 0 : index
    %c0_2 = arith.constant 0 : index
    %0 = vector.load %arg1[%c0, %c0_0, %c0_1, %c0_2] : memref<2x8x8x64xbf16, #tpu.memory_space<vmem>>, vector<2x8x8x64xbf16>
    %1 = vector.shape_cast %0 : vector<2x8x8x64xbf16> to vector<128x64xbf16>
    %c0_3 = arith.constant 0 : index
    %c0_4 = arith.constant 0 : index
    %2 = vector.load %arg3[%c0_3, %c0_4] : memref<64x8xbf16, #tpu.memory_space<vmem>>, vector<64x8xbf16>
    %cst = arith.constant dense<0.000000e+00> : vector<128x8xf32>
    %3 = tpu.matmul %1, %2, %cst {dimension_numbers = #tpu.dot_dimension_numbers<[1], [0], [0], [1], [0, 0, 1, 1], [], []>} : vector<128x64xbf16>, vector<64x8xbf16>, vector<128x8xf32> -> vector<128x8xf32>
    %cst_5 = arith.constant 0.000000e+00 : f32
    %4 = vector.broadcast %cst_5 : f32 to vector<128x8xf32>
    %5 = arith.maximumf %3, %4 : vector<128x8xf32>
    %6 = vector.shape_cast %5 : vector<128x8xf32> to vector<2x8x8x8xf32>
    %cst_6 = arith.constant 0.000000e+00 : f32
    %7 = vector.broadcast %cst_6 : f32 to vector<2x1x8x8xf32>
    %8 = tpu.concatenate %6, %7 in 1 : vector<2x8x8x8xf32>, vector<2x1x8x8xf32> -> vector<2x9x8x8xf32>
    %cst_7 = arith.constant 0.000000e+00 : f32
    %9 = vector.broadcast %cst_7 : f32 to vector<2x9x1x8xf32>
    %10 = tpu.concatenate %8, %9 in 2 : vector<2x9x8x8xf32>, vector<2x9x1x8xf32> -> vector<2x9x9x8xf32>
    %11 = arith.truncf %10 : vector<2x9x9x8xf32> to vector<2x9x9x8xbf16>
    %cst_8 = arith.constant 0.000000e+00 : f32
    %12 = vector.broadcast %cst_8 : f32 to vector<128x16xf32>
    %13 = vector.extract_strided_slice %11 {offsets = [0, 0, 0, 0], sizes = [2, 8, 8, 8], strides = [1, 1, 1, 1]} : vector<2x9x9x8xbf16> to vector<2x8x8x8xbf16>
    %14 = vector.shape_cast %13 : vector<2x8x8x8xbf16> to vector<128x8xbf16>
    %c0_9 = arith.constant 0 : index
    %c0_10 = arith.constant 0 : index
    %c0_11 = arith.constant 0 : index
    %15 = vector.load %arg4[%c0_9, %c0_10, %c0_11] : memref<4x8x16xbf16, #tpu.memory_space<vmem>>, vector<1x8x16xbf16>
    %16 = vector.shape_cast %15 : vector<1x8x16xbf16> to vector<8x16xbf16>
    %cst_12 = arith.constant dense<0.000000e+00> : vector<128x16xf32>
    %17 = tpu.matmul %14, %16, %cst_12 {dimension_numbers = #tpu.dot_dimension_numbers<[1], [0], [0], [1], [0, 0, 1, 1], [], []>} : vector<128x8xbf16>, vector<8x16xbf16>, vector<128x16xf32> -> vector<128x16xf32>
    %18 = arith.addf %12, %17 : vector<128x16xf32>
    %19 = vector.extract_strided_slice %11 {offsets = [0, 0, 1, 0], sizes = [2, 8, 8, 8], strides = [1, 1, 1, 1]} : vector<2x9x9x8xbf16> to vector<2x8x8x8xbf16>
    %20 = vector.shape_cast %19 : vector<2x8x8x8xbf16> to vector<128x8xbf16>
    %c1 = arith.constant 1 : index
    %c0_13 = arith.constant 0 : index
    %c0_14 = arith.constant 0 : index
    %21 = vector.load %arg4[%c1, %c0_13, %c0_14] : memref<4x8x16xbf16, #tpu.memory_space<vmem>>, vector<1x8x16xbf16>
    %22 = vector.shape_cast %21 : vector<1x8x16xbf16> to vector<8x16xbf16>
    %cst_15 = arith.constant dense<0.000000e+00> : vector<128x16xf32>
    %23 = tpu.matmul %20, %22, %cst_15 {dimension_numbers = #tpu.dot_dimension_numbers<[1], [0], [0], [1], [0, 0, 1, 1], [], []>} : vector<128x8xbf16>, vector<8x16xbf16>, vector<128x16xf32> -> vector<128x16xf32>
    %24 = arith.addf %18, %23 : vector<128x16xf32>
    %25 = vector.extract_strided_slice %11 {offsets = [0, 1, 0, 0], sizes = [2, 8, 8, 8], strides = [1, 1, 1, 1]} : vector<2x9x9x8xbf16> to vector<2x8x8x8xbf16>
    %26 = vector.shape_cast %25 : vector<2x8x8x8xbf16> to vector<128x8xbf16>
    %c2 = arith.constant 2 : index
    %c0_16 = arith.constant 0 : index
    %c0_17 = arith.constant 0 : index
    %27 = vector.load %arg4[%c2, %c0_16, %c0_17] : memref<4x8x16xbf16, #tpu.memory_space<vmem>>, vector<1x8x16xbf16>
    %28 = vector.shape_cast %27 : vector<1x8x16xbf16> to vector<8x16xbf16>
    %cst_18 = arith.constant dense<0.000000e+00> : vector<128x16xf32>
    %29 = tpu.matmul %26, %28, %cst_18 {dimension_numbers = #tpu.dot_dimension_numbers<[1], [0], [0], [1], [0, 0, 1, 1], [], []>} : vector<128x8xbf16>, vector<8x16xbf16>, vector<128x16xf32> -> vector<128x16xf32>
    %30 = arith.addf %24, %29 : vector<128x16xf32>
    %31 = vector.extract_strided_slice %11 {offsets = [0, 1, 1, 0], sizes = [2, 8, 8, 8], strides = [1, 1, 1, 1]} : vector<2x9x9x8xbf16> to vector<2x8x8x8xbf16>
    %32 = vector.shape_cast %31 : vector<2x8x8x8xbf16> to vector<128x8xbf16>
    %c3 = arith.constant 3 : index
    %c0_19 = arith.constant 0 : index
    %c0_20 = arith.constant 0 : index
    %33 = vector.load %arg4[%c3, %c0_19, %c0_20] : memref<4x8x16xbf16, #tpu.memory_space<vmem>>, vector<1x8x16xbf16>
    %34 = vector.shape_cast %33 : vector<1x8x16xbf16> to vector<8x16xbf16>
    %cst_21 = arith.constant dense<0.000000e+00> : vector<128x16xf32>
    %35 = tpu.matmul %32, %34, %cst_21 {dimension_numbers = #tpu.dot_dimension_numbers<[1], [0], [0], [1], [0, 0, 1, 1], [], []>} : vector<128x8xbf16>, vector<8x16xbf16>, vector<128x16xf32> -> vector<128x16xf32>
    %36 = arith.addf %30, %35 : vector<128x16xf32>
    %c0_22 = arith.constant 0 : index
    %c0_23 = arith.constant 0 : index
    %c0_24 = arith.constant 0 : index
    %37 = vector.load %arg5[%c0_22, %c0_23, %c0_24] : memref<4x64x256xf32, #tpu.memory_space<vmem>>, vector<1x64x256xf32>
    %38 = vector.shape_cast %37 : vector<1x64x256xf32> to vector<64x256xf32>
    %c1_25 = arith.constant 1 : index
    %c0_26 = arith.constant 0 : index
    %c0_27 = arith.constant 0 : index
    %39 = vector.load %arg5[%c1_25, %c0_26, %c0_27] : memref<4x64x256xf32, #tpu.memory_space<vmem>>, vector<1x64x256xf32>
    %40 = vector.shape_cast %39 : vector<1x64x256xf32> to vector<64x256xf32>
    %c2_28 = arith.constant 2 : index
    %c0_29 = arith.constant 0 : index
    %c0_30 = arith.constant 0 : index
    %41 = vector.load %arg5[%c2_28, %c0_29, %c0_30] : memref<4x64x256xf32, #tpu.memory_space<vmem>>, vector<1x64x256xf32>
    %42 = vector.shape_cast %41 : vector<1x64x256xf32> to vector<64x256xf32>
    %c3_31 = arith.constant 3 : index
    %c0_32 = arith.constant 0 : index
    %c0_33 = arith.constant 0 : index
    %43 = vector.load %arg5[%c3_31, %c0_32, %c0_33] : memref<4x64x256xf32, #tpu.memory_space<vmem>>, vector<1x64x256xf32>
    %44 = vector.shape_cast %43 : vector<1x64x256xf32> to vector<64x256xf32>
    %45 = vector.extract_strided_slice %36 {offsets = [0, 0], sizes = [64, 16], strides = [1, 1]} : vector<128x16xf32> to vector<64x16xf32>
    %46 = tpu.transpose %45, [1, 0] : vector<64x16xf32> -> vector<16x64xf32>
    %cst_34 = arith.constant 0.000000e+00 : f32
    %47 = vector.broadcast %cst_34 : f32 to vector<4x256xf32>
    %48 = vector.extract_strided_slice %46 {offsets = [0, 0], sizes = [4, 64], strides = [1, 1]} : vector<16x64xf32> to vector<4x64xf32>
    %cst_35 = arith.constant dense<0.000000e+00> : vector<4x256xf32>
    %49 = tpu.matmul %48, %38, %cst_35 {dimension_numbers = #tpu.dot_dimension_numbers<[1], [0], [0], [1], [0, 0, 1, 1], [], []>} : vector<4x64xf32>, vector<64x256xf32>, vector<4x256xf32> -> vector<4x256xf32>
    %50 = arith.addf %47, %49 : vector<4x256xf32>
    %51 = vector.extract_strided_slice %46 {offsets = [4, 0], sizes = [4, 64], strides = [1, 1]} : vector<16x64xf32> to vector<4x64xf32>
    %cst_36 = arith.constant dense<0.000000e+00> : vector<4x256xf32>
    %52 = tpu.matmul %51, %40, %cst_36 {dimension_numbers = #tpu.dot_dimension_numbers<[1], [0], [0], [1], [0, 0, 1, 1], [], []>} : vector<4x64xf32>, vector<64x256xf32>, vector<4x256xf32> -> vector<4x256xf32>
    %53 = arith.addf %50, %52 : vector<4x256xf32>
    %54 = vector.extract_strided_slice %46 {offsets = [8, 0], sizes = [4, 64], strides = [1, 1]} : vector<16x64xf32> to vector<4x64xf32>
    %cst_37 = arith.constant dense<0.000000e+00> : vector<4x256xf32>
    %55 = tpu.matmul %54, %42, %cst_37 {dimension_numbers = #tpu.dot_dimension_numbers<[1], [0], [0], [1], [0, 0, 1, 1], [], []>} : vector<4x64xf32>, vector<64x256xf32>, vector<4x256xf32> -> vector<4x256xf32>
    %56 = arith.addf %53, %55 : vector<4x256xf32>
    %57 = vector.extract_strided_slice %46 {offsets = [12, 0], sizes = [4, 64], strides = [1, 1]} : vector<16x64xf32> to vector<4x64xf32>
    %cst_38 = arith.constant dense<0.000000e+00> : vector<4x256xf32>
    %58 = tpu.matmul %57, %44, %cst_38 {dimension_numbers = #tpu.dot_dimension_numbers<[1], [0], [0], [1], [0, 0, 1, 1], [], []>} : vector<4x64xf32>, vector<64x256xf32>, vector<4x256xf32> -> vector<4x256xf32>
    %59 = arith.addf %56, %58 : vector<4x256xf32>
    %60 = vector.extract_strided_slice %36 {offsets = [64, 0], sizes = [64, 16], strides = [1, 1]} : vector<128x16xf32> to vector<64x16xf32>
    %61 = tpu.transpose %60, [1, 0] : vector<64x16xf32> -> vector<16x64xf32>
    %cst_39 = arith.constant 0.000000e+00 : f32
    %62 = vector.broadcast %cst_39 : f32 to vector<4x256xf32>
    %63 = vector.extract_strided_slice %61 {offsets = [0, 0], sizes = [4, 64], strides = [1, 1]} : vector<16x64xf32> to vector<4x64xf32>
    %cst_40 = arith.constant dense<0.000000e+00> : vector<4x256xf32>
    %64 = tpu.matmul %63, %38, %cst_40 {dimension_numbers = #tpu.dot_dimension_numbers<[1], [0], [0], [1], [0, 0, 1, 1], [], []>} : vector<4x64xf32>, vector<64x256xf32>, vector<4x256xf32> -> vector<4x256xf32>
    %65 = arith.addf %62, %64 : vector<4x256xf32>
    %66 = vector.extract_strided_slice %61 {offsets = [4, 0], sizes = [4, 64], strides = [1, 1]} : vector<16x64xf32> to vector<4x64xf32>
    %cst_41 = arith.constant dense<0.000000e+00> : vector<4x256xf32>
    %67 = tpu.matmul %66, %40, %cst_41 {dimension_numbers = #tpu.dot_dimension_numbers<[1], [0], [0], [1], [0, 0, 1, 1], [], []>} : vector<4x64xf32>, vector<64x256xf32>, vector<4x256xf32> -> vector<4x256xf32>
    %68 = arith.addf %65, %67 : vector<4x256xf32>
    %69 = vector.extract_strided_slice %61 {offsets = [8, 0], sizes = [4, 64], strides = [1, 1]} : vector<16x64xf32> to vector<4x64xf32>
    %cst_42 = arith.constant dense<0.000000e+00> : vector<4x256xf32>
    %70 = tpu.matmul %69, %42, %cst_42 {dimension_numbers = #tpu.dot_dimension_numbers<[1], [0], [0], [1], [0, 0, 1, 1], [], []>} : vector<4x64xf32>, vector<64x256xf32>, vector<4x256xf32> -> vector<4x256xf32>
    %71 = arith.addf %68, %70 : vector<4x256xf32>
    %72 = vector.extract_strided_slice %61 {offsets = [12, 0], sizes = [4, 64], strides = [1, 1]} : vector<16x64xf32> to vector<4x64xf32>
    %cst_43 = arith.constant dense<0.000000e+00> : vector<4x256xf32>
    %73 = tpu.matmul %72, %44, %cst_43 {dimension_numbers = #tpu.dot_dimension_numbers<[1], [0], [0], [1], [0, 0, 1, 1], [], []>} : vector<4x64xf32>, vector<64x256xf32>, vector<4x256xf32> -> vector<4x256xf32>
    %74 = arith.addf %71, %73 : vector<4x256xf32>
    %cst_44 = arith.constant dense<0.000000e+00> : vector<4xf32>
    %75 = vector.multi_reduction <add>, %59, %cst_44 [1] : vector<4x256xf32> to vector<4xf32>
    %76 = vector.shape_cast %75 : vector<4xf32> to vector<4x1xf32>
    %cst_45 = arith.constant 0.000000e+00 : f32
    %77 = vector.broadcast %cst_45 : f32 to vector<4x1xf32>
    %78 = arith.addf %77, %76 : vector<4x1xf32>
    %cst_46 = arith.constant dense<0.000000e+00> : vector<4xf32>
    %79 = vector.multi_reduction <add>, %74, %cst_46 [1] : vector<4x256xf32> to vector<4xf32>
    %80 = vector.shape_cast %79 : vector<4xf32> to vector<4x1xf32>
    %81 = arith.addf %78, %80 : vector<4x1xf32>
    %cst_47 = arith.constant 0.001953125 : f32
    %82 = vector.broadcast %cst_47 : f32 to vector<4x1xf32>
    %83 = arith.mulf %81, %82 : vector<4x1xf32>
    %84 = vector.broadcast %83 : vector<4x1xf32> to vector<4x256xf32>
    %85 = arith.subf %59, %84 : vector<4x256xf32>
    %86 = arith.mulf %85, %85 : vector<4x256xf32>
    %cst_48 = arith.constant dense<0.000000e+00> : vector<4xf32>
    %87 = vector.multi_reduction <add>, %86, %cst_48 [1] : vector<4x256xf32> to vector<4xf32>
    %88 = vector.shape_cast %87 : vector<4xf32> to vector<4x1xf32>
    %cst_49 = arith.constant 0.000000e+00 : f32
    %89 = vector.broadcast %cst_49 : f32 to vector<4x1xf32>
    %90 = arith.addf %89, %88 : vector<4x1xf32>
    %91 = vector.broadcast %83 : vector<4x1xf32> to vector<4x256xf32>
    %92 = arith.subf %74, %91 : vector<4x256xf32>
    %93 = arith.mulf %92, %92 : vector<4x256xf32>
    %cst_50 = arith.constant dense<0.000000e+00> : vector<4xf32>
    %94 = vector.multi_reduction <add>, %93, %cst_50 [1] : vector<4x256xf32> to vector<4xf32>
    %95 = vector.shape_cast %94 : vector<4xf32> to vector<4x1xf32>
    %96 = arith.addf %90, %95 : vector<4x1xf32>
    %cst_51 = arith.constant 0.001953125 : f32
    %97 = vector.broadcast %cst_51 : f32 to vector<4x1xf32>
    %98 = arith.mulf %96, %97 : vector<4x1xf32>
    %cst_52 = arith.constant 9.99999974E-6 : f32
    %99 = vector.broadcast %cst_52 : f32 to vector<4x1xf32>
    %100 = arith.addf %98, %99 : vector<4x1xf32>
    %101 = math.rsqrt %100 : vector<4x1xf32>
    %c0_53 = arith.constant 0 : index
    %c0_54 = arith.constant 0 : index
    %102 = vector.load %arg6[%c0_53, %c0_54] : memref<4x1xf32, #tpu.memory_space<vmem>>, vector<4x1xf32>
    %103 = arith.mulf %101, %102 : vector<4x1xf32>
    %c0_55 = arith.constant 0 : index
    %c0_56 = arith.constant 0 : index
    %104 = vector.load %arg7[%c0_55, %c0_56] : memref<4x1xf32, #tpu.memory_space<vmem>>, vector<4x1xf32>
    %105 = arith.mulf %83, %103 : vector<4x1xf32>
    %106 = arith.subf %104, %105 : vector<4x1xf32>
    %c0_57 = arith.constant 0 : index
    %c0_58 = arith.constant 0 : index
    %c0_59 = arith.constant 0 : index
    %107 = vector.load %arg2[%c0_57, %c0_58, %c0_59] : memref<2x4x256xf32, #tpu.memory_space<vmem>>, vector<1x4x256xf32>
    %108 = vector.shape_cast %107 : vector<1x4x256xf32> to vector<4x256xf32>
    %109 = vector.broadcast %103 : vector<4x1xf32> to vector<4x256xf32>
    %110 = arith.mulf %59, %109 : vector<4x256xf32>
    %111 = vector.broadcast %106 : vector<4x1xf32> to vector<4x256xf32>
    %112 = arith.addf %110, %111 : vector<4x256xf32>
    %113 = tpu.concatenate %108, %112 in 0 : vector<4x256xf32>, vector<4x256xf32> -> vector<8x256xf32>
    %c0_60 = arith.constant 0 : index
    %c0_61 = arith.constant 0 : index
    %c0_62 = arith.constant 0 : index
    %114 = vector.load %arg8[%c0_60, %c0_61, %c0_62] : memref<2x8x256xf32, #tpu.memory_space<vmem>>, vector<1x8x256xf32>
    %115 = vector.shape_cast %114 : vector<1x8x256xf32> to vector<8x256xf32>
    %116 = vector.shape_cast %113 : vector<8x256xf32> to vector<1x8x256xf32>
    tpu.vector_store %arg8[%c0_60, %c0_61, %c0_62], %116 {strides = array<i32>} : memref<2x8x256xf32, #tpu.memory_space<vmem>>, vector<1x8x256xf32>,
    %c1_63 = arith.constant 1 : index
    %c0_64 = arith.constant 0 : index
    %c0_65 = arith.constant 0 : index
    %117 = vector.load %arg2[%c1_63, %c0_64, %c0_65] : memref<2x4x256xf32, #tpu.memory_space<vmem>>, vector<1x4x256xf32>
    %118 = vector.shape_cast %117 : vector<1x4x256xf32> to vector<4x256xf32>
    %119 = vector.broadcast %103 : vector<4x1xf32> to vector<4x256xf32>
    %120 = arith.mulf %74, %119 : vector<4x256xf32>
    %121 = vector.broadcast %106 : vector<4x1xf32> to vector<4x256xf32>
    %122 = arith.addf %120, %121 : vector<4x256xf32>
    %123 = tpu.concatenate %118, %122 in 0 : vector<4x256xf32>, vector<4x256xf32> -> vector<8x256xf32>
    %c1_66 = arith.constant 1 : index
    %c0_67 = arith.constant 0 : index
    %c0_68 = arith.constant 0 : index
    %124 = vector.load %arg8[%c1_66, %c0_67, %c0_68] : memref<2x8x256xf32, #tpu.memory_space<vmem>>, vector<1x8x256xf32>
    %125 = vector.shape_cast %124 : vector<1x8x256xf32> to vector<8x256xf32>
    %126 = vector.shape_cast %123 : vector<8x256xf32> to vector<1x8x256xf32>
    tpu.vector_store %arg8[%c1_66, %c0_67, %c0_68], %126 {strides = array<i32>} : memref<2x8x256xf32, #tpu.memory_space<vmem>>, vector<1x8x256xf32>,
    return
  }
  func.func @transform_0(%arg0: i32) -> (i32, i32, i32, i32) {
    %c0_i32 = arith.constant 0 : i32
    %c0_i32_0 = arith.constant 0 : i32
    %c0_i32_1 = arith.constant 0 : i32
    %c0_i32_2 = arith.constant 0 : i32
    %c0_i32_3 = arith.constant 0 : i32
    return %c0_i32, %c0_i32_0, %c0_i32_1, %c0_i32_2 : i32, i32, i32, i32
  }
  func.func @transform_1(%arg0: i32) -> (i32, i32, i32) {
    %c0_i32 = arith.constant 0 : i32
    %c0_i32_0 = arith.constant 0 : i32
    %c0_i32_1 = arith.constant 0 : i32
    %c0_i32_2 = arith.constant 0 : i32
    return %c0_i32, %c0_i32_0, %c0_i32_1 : i32, i32, i32
  }
  func.func @transform_2(%arg0: i32) -> (i32, i32) {
    %c0_i32 = arith.constant 0 : i32
    %c0_i32_0 = arith.constant 0 : i32
    %c0_i32_1 = arith.constant 0 : i32
    return %c0_i32, %c0_i32_0 : i32, i32
  }
  func.func @transform_3(%arg0: i32) -> (i32, i32, i32) {
    %c0_i32 = arith.constant 0 : i32
    %c0_i32_0 = arith.constant 0 : i32
    %c0_i32_1 = arith.constant 0 : i32
    %c0_i32_2 = arith.constant 0 : i32
    return %c0_i32, %c0_i32_0, %c0_i32_1 : i32, i32, i32
  }
  func.func @transform_4(%arg0: i32) -> (i32, i32, i32) {
    %c0_i32 = arith.constant 0 : i32
    %c0_i32_0 = arith.constant 0 : i32
    %c0_i32_1 = arith.constant 0 : i32
    %c0_i32_2 = arith.constant 0 : i32
    return %c0_i32, %c0_i32_0, %c0_i32_1 : i32, i32, i32
  }
  func.func @transform_5(%arg0: i32) -> (i32, i32) {
    %c0_i32 = arith.constant 0 : i32
    %c0_i32_0 = arith.constant 0 : i32
    %c0_i32_1 = arith.constant 0 : i32
    return %c0_i32, %c0_i32_0 : i32, i32
  }
  func.func @transform_6(%arg0: i32) -> (i32, i32) {
    %c0_i32 = arith.constant 0 : i32
    %c0_i32_0 = arith.constant 0 : i32
    %c0_i32_1 = arith.constant 0 : i32
    return %c0_i32, %c0_i32_0 : i32, i32
  }
  func.func @transform_7(%arg0: i32) -> (i32, i32, i32) {
    %c0_i32 = arith.constant 0 : i32
    %c0_i32_0 = arith.constant 0 : i32
    %c0_i32_1 = arith.constant 0 : i32
    %c0_i32_2 = arith.constant 0 : i32
    return %c0_i32, %c0_i32_0, %c0_i32_1 : i32, i32, i32
  }
}

</mosaic_0001>

<llo_original>
// kernel: seg_v3_block_innermost.1
$region0: #{seg_v3_block_innermost.1}
  #allocation0 [shape = 'u32[]', space=smem, size = 0x4, offset = 0x4, fixed_abs, tag = 'smem constant byte address 0x4 - core index']
  #allocation1 [shape = 'u32[144,128]{1,0:T(1,128)}', space=vmem, size = 0x12000, scoped, tag = 'internal scratch']
  %s0 = inlined_call_operand.vmem [shape: bf16[2,8,8,64], index: 0, kind: input, shape index: {}]
  %s1 = inlined_call_operand.vmem [shape: f32[2,4,256], index: 1, kind: input, shape index: {}]
  %s2 = inlined_call_operand.vmem [shape: bf16[64,8], index: 2, kind: input, shape index: {}]
  %s3 = inlined_call_operand.vmem [shape: bf16[4,8,16], index: 3, kind: input, shape index: {}]
  %s4 = inlined_call_operand.vmem [shape: f32[4,64,256], index: 4, kind: input, shape index: {}]
  %s5 = inlined_call_operand.vmem [shape: f32[4,1], index: 5, kind: input, shape index: {}]
  %s6 = inlined_call_operand.vmem [shape: f32[4,1], index: 6, kind: input, shape index: {}]
  %s7 = inlined_call_operand.vmem [shape: f32[2,8,256], index: 7, kind: output, shape index: {}]
  %s8 = sld [smem:[#allocation0]]
  $region38: #{seg_v3_block_innermost.1} parent=0
    _
  %s10 = ssub.s32 1, %s8
  %s11 = scalar_select 0, %s10, %s8
  // Predicated region
  $region2: #{seg_v3_block_innermost.1} parent=0 // pred_check
    _
  $region3: #{seg_v3_block_innermost.1} parent=0 // pred_check_branch
    %13 = sbr.rel (0) target = $region5
  $region4: #{seg_v3_block_innermost.1} parent=0 // pred_region
    _
  $region5: #{seg_v3_block_innermost.1} parent=0 // pred_fallthru
    _
  // Predicated region
  $region6: #{seg_v3_block_innermost.1} parent=0 // pred_check
    _
  $region7: #{seg_v3_block_innermost.1} parent=0 // pred_check_branch
    %15 = sbr.rel (0) target = $region9
  $region8: #{seg_v3_block_innermost.1} parent=0 // pred_region
    _
  $region9: #{seg_v3_block_innermost.1} parent=0 // pred_fallthru
    _
  // Predicated region
  $region10: #{seg_v3_block_innermost.1} parent=0 // pred_check
    _
  $region11: #{seg_v3_block_innermost.1} parent=0 // pred_check_branch
    %17 = sbr.rel (0) target = $region13
  $region12: #{seg_v3_block_innermost.1} parent=0 // pred_region
    _
  $region13: #{seg_v3_block_innermost.1} parent=0 // pred_fallthru
    _
  // Predicated region
  $region14: #{seg_v3_block_innermost.1} parent=0 // pred_check
    _
  $region15: #{seg_v3_block_innermost.1} parent=0 // pred_check_branch
    %19 = sbr.rel (0) target = $region17
  $region16: #{seg_v3_block_innermost.1} parent=0 // pred_region
    _
  $region17: #{seg_v3_block_innermost.1} parent=0 // pred_fallthru
    _
  // Predicated region
  $region18: #{seg_v3_block_innermost.1} parent=0 // pred_check
    _
  $region19: #{seg_v3_block_innermost.1} parent=0 // pred_check_branch
    %21 = sbr.rel (0) target = $region21
  $region20: #{seg_v3_block_innermost.1} parent=0 // pred_region
    _
  $region21: #{seg_v3_block_innermost.1} parent=0 // pred_fallthru
    _
  // Predicated region
  $region22: #{seg_v3_block_innermost.1} parent=0 // pred_check
    _
  $region23: #{seg_v3_block_innermost.1} parent=0 // pred_check_branch
    %23 = sbr.rel (0) target = $region25
  $region24: #{seg_v3_block_innermost.1} parent=0 // pred_region
    _
  $region25: #{seg_v3_block_innermost.1} parent=0 // pred_fallthru
    _
  // Predicated region
  $region26: #{seg_v3_block_innermost.1} parent=0 // pred_check
    _
  $region27: #{seg_v3_block_innermost.1} parent=0 // pred_check_branch
    %25 = sbr.rel (0) target = $region29
  $region28: #{seg_v3_block_innermost.1} parent=0 // pred_region
    _
  $region29: #{seg_v3_block_innermost.1} parent=0 // pred_fallthru
    _
  %v27 = vld [vmem:[%s0] sm:$0xf]
  %v28 = vld [vmem:[%s0 + $0x4] sm:$0xf]
  %v29 = vld [vmem:[%s0 + $0x8] sm:$0xf]
  %v30 = vld [vmem:[%s0 + $0xc] sm:$0xf]
  %v31 = vld [vmem:[%s0 + $0x10] sm:$0xf]
  %v32 = vld [vmem:[%s0 + $0x14] sm:$0xf]
  %v33 = vld [vmem:[%s0 + $0x18] sm:$0xf]
  %v34 = vld [vmem:[%s0 + $0x1c] sm:$0xf]
  %v35 = vld [vmem:[%s0 + $0x20] sm:$0xf]
  %v36 = vld [vmem:[%s0 + $0x24] sm:$0xf]
  %v37 = vld [vmem:[%s0 + $0x28] sm:$0xf]
  %v38 = vld [vmem:[%s0 + $0x2c] sm:$0xf]
  %v39 = vld [vmem:[%s0 + $0x30] sm:$0xf]
  %v40 = vld [vmem:[%s0 + $0x34] sm:$0xf]
  %v41 = vld [vmem:[%s0 + $0x38] sm:$0xf]
  %v42 = vld [vmem:[%s0 + $0x3c] sm:$0xf]
  %v43 = vld [vmem:[%s2] sm:$0xf]
  %v44 = vld [vmem:[%s2 + $0x4] sm:$0xf]
  %v45 = vld [vmem:[%s2 + $0x8] sm:$0xf]
  %v46 = vld [vmem:[%s2 + $0xc] sm:$0xf]
  %v47 = vld [vmem:[%s2 + $0x10] sm:$0xf]
  %v48 = vld [vmem:[%s2 + $0x14] sm:$0xf]
  %v49 = vld [vmem:[%s2 + $0x18] sm:$0xf]
  %v50 = vld [vmem:[%s2 + $0x1c] sm:$0xf]
  %v67 = vunpack.c.l.b16 %v27
  %v68 = vunpack.c.l.b16 %v28
  %v69 = vunpack.c.l.b16 %v29
  %v70 = vunpack.c.l.b16 %v30
  %v71 = vunpack.c.l.b16 %v31
  %v72 = vunpack.c.l.b16 %v32
  %v73 = vunpack.c.l.b16 %v33
  %v74 = vunpack.c.l.b16 %v34
  %v75 = vunpack.c.l.b16 %v35
  %v76 = vunpack.c.l.b16 %v36
  %v77 = vunpack.c.l.b16 %v37
  %v78 = vunpack.c.l.b16 %v38
  %v79 = vunpack.c.l.b16 %v39
  %v80 = vunpack.c.l.b16 %v40
  %v81 = vunpack.c.l.b16 %v41
  %v82 = vunpack.c.l.b16 %v42
  %v83 = vpack.c.b16 %v68, %v67
  %v84 = vpack.c.b16 %v70, %v69
  %v85 = vpack.c.b16 %v72, %v71
  %v86 = vpack.c.b16 %v74, %v73
  %v87 = vpack.c.b16 %v76, %v75
  %v88 = vpack.c.b16 %v78, %v77
  %v89 = vpack.c.b16 %v80, %v79
  %v90 = vpack.c.b16 %v82, %v81
  %v99 = vunpack.c.l.b16 %v43
  %v100 = vunpack.c.l.b16 %v44
  %v101 = vunpack.c.l.b16 %v45
  %v102 = vunpack.c.l.b16 %v46
  %v103 = vunpack.c.l.b16 %v47
  %v104 = vunpack.c.l.b16 %v48
  %v105 = vunpack.c.l.b16 %v49
  %v106 = vunpack.c.l.b16 %v50
  %v107 = vpack.c.b16 %v100, %v99
  %v108 = vpack.c.b16 %v102, %v101
  %v109 = vpack.c.b16 %v104, %v103
  %v110 = vpack.c.b16 %v106, %v105
  %vm115 = vcmask 523264
  %v117 = vsel %vm115, %v83, 0
  %v120 = vsel %vm115, %v84, 0
  %v123 = vsel %vm115, %v85, 0
  %v126 = vsel %vm115, %v86, 0
  %v129 = vsel %vm115, %v87, 0
  %v132 = vsel %vm115, %v88, 0
  %v135 = vsel %vm115, %v89, 0
  %v138 = vsel %vm115, %v90, 0
  %140 = vmatprep.subr.bf16.mxu0 0
  %141 = vmatpush1.bf16.msra.mxu0 %v107
  %142 = vmatprep.subr.bf16.mxu0 0
  %143 = vmatpush1.bf16.msra.mxu0 %v108
  %144 = vmatprep.subr.bf16.mxu0 0
  %145 = vmatpush1.bf16.msra.mxu0 %v109
  %146 = vmatprep.subr.bf16.mxu0 0
  %147 = vmatpush1.bf16.msra.mxu0 %v110
  %148 = vmatprep.subr.bf16.mxu0 0
  %149 = vmatpush1.bf16.msra.mxu0 0
  %150 = vmatprep.subr.bf16.mxu0 0
  %151 = vmatpush1.bf16.msra.mxu0 0
  %152 = vmatprep.subr.bf16.mxu0 0
  %153 = vmatpush1.bf16.msra.mxu0 0
  %154 = vmatprep.subr.bf16.mxu0 0
  %155 = vmatpush1.bf16.msra.mxu0 0
  %156 = vmatprep.subr.bf16.mxu0 0
  %157 = vmatpush1.bf16.msra.mxu0 0
  %158 = vmatprep.subr.bf16.mxu0 0
  %159 = vmatpush1.bf16.msra.mxu0 0
  %160 = vmatprep.subr.bf16.mxu0 0
  %161 = vmatpush1.bf16.msra.mxu0 0
  %162 = vmatprep.subr.bf16.mxu0 0
  %163 = vmatpush1.bf16.msra.mxu0 0
  %164 = vmatprep.subr.bf16.mxu0 0
  %165 = vmatpush1.bf16.msra.mxu0 0
  %166 = vmatprep.subr.bf16.mxu0 0
  %167 = vmatpush1.bf16.msra.mxu0 0
  %168 = vmatprep.subr.bf16.mxu0 0
  %169 = vmatpush1.bf16.msra.mxu0 0
  %170 = vmatprep.subr.bf16.mxu0 0
  %171 = vmatpush1.bf16.msra.mxu0 0
  %172 = vmatprep.mubr.bf16.mxu0 0
  %173 = vmatmul.mubr.bf16.gmra.mrb[0].mxu0 %v117
  %v174 = vpop.f32.mrb[0].mxu0
  %v175 = vadd.f32 0.0, %v174
  %v176 = vpop.f32.mrb[0].mxu0
  %v177 = vpop.f32.mrb[0].mxu0
  %v178 = vadd.f32 0.0, %v177
  %v179 = vpop.f32.mrb[0].mxu0
  %180 = vmatprep.mubr.bf16.mxu0 0
  %181 = vmatmul.mubr.bf16.gmra.mrb[0].mxu0 %v120
  %v182 = vpop.f32.mrb[0].mxu0
  %v183 = vadd.f32 0.0, %v182
  %v184 = vpop.f32.mrb[0].mxu0
  %v185 = vpop.f32.mrb[0].mxu0
  %v186 = vadd.f32 0.0, %v185
  %v187 = vpop.f32.mrb[0].mxu0
  %188 = vmatprep.mubr.bf16.mxu0 0
  %189 = vmatmul.mubr.bf16.gmra.mrb[0].mxu0 %v123
  %v190 = vpop.f32.mrb[0].mxu0
  %v191 = vadd.f32 0.0, %v190
  %v192 = vpop.f32.mrb[0].mxu0
  %v193 = vpop.f32.mrb[0].mxu0
  %v194 = vadd.f32 0.0, %v193
  %v195 = vpop.f32.mrb[0].mxu0
  %196 = vmatprep.mubr.bf16.mxu0 0
  %197 = vmatmul.mubr.bf16.gmra.mrb[0].mxu0 %v126
  %v198 = vpop.f32.mrb[0].mxu0
  %v199 = vadd.f32 0.0, %v198
  %v200 = vpop.f32.mrb[0].mxu0
  %v201 = vpop.f32.mrb[0].mxu0
  %v202 = vadd.f32 0.0, %v201
  %v203 = vpop.f32.mrb[0].mxu0
  %204 = vmatprep.mubr.bf16.mxu0 0
  %205 = vmatmul.mubr.bf16.gmra.mrb[0].mxu0 %v129
  %v206 = vpop.f32.mrb[0].mxu0
  %v207 = vadd.f32 0.0, %v206
  %v208 = vpop.f32.mrb[0].mxu0
  %v209 = vpop.f32.mrb[0].mxu0
  %v210 = vadd.f32 0.0, %v209
  %v211 = vpop.f32.mrb[0].mxu0
  %212 = vmatprep.mubr.bf16.mxu0 0
  %213 = vmatmul.mubr.bf16.gmra.mrb[0].mxu0 %v132
  %v214 = vpop.f32.mrb[0].mxu0
  %v215 = vadd.f32 0.0, %v214
  %v216 = vpop.f32.mrb[0].mxu0
  %v217 = vpop.f32.mrb[0].mxu0
  %v218 = vadd.f32 0.0, %v217
  %v219 = vpop.f32.mrb[0].mxu0
  %220 = vmatprep.mubr.bf16.mxu0 0
  %221 = vmatmul.mubr.bf16.gmra.mrb[0].mxu0 %v135
  %v222 = vpop.f32.mrb[0].mxu0
  %v223 = vadd.f32 0.0, %v222
  %v224 = vpop.f32.mrb[0].mxu0
  %v225 = vpop.f32.mrb[0].mxu0
  %v226 = vadd.f32 0.0, %v225
  %v227 = vpop.f32.mrb[0].mxu0
  %228 = vmatprep.mubr.bf16.mxu0 0
  %229 = vmatmul.mubr.bf16.gmra.mrb[0].mxu0 %v138
  %v230 = vpop.f32.mrb[0].mxu0
  %v231 = vadd.f32 0.0, %v230
  %v232 = vpop.f32.mrb[0].mxu0
  %v233 = vpop.f32.mrb[0].mxu0
  %v234 = vadd.f32 0.0, %v233
  %v235 = vpop.f32.mrb[0].mxu0
  %236 = vdwg.mxu0
  %v237 = vmax.f32 %v175, 0.0
  %v238 = vmax.f32 %v178, 0.0
  %v239 = vmax.f32 %v183, 0.0
  %v240 = vmax.f32 %v186, 0.0
  %v241 = vmax.f32 %v191, 0.0
  %v242 = vmax.f32 %v194, 0.0
  %v243 = vmax.f32 %v199, 0.0
  %v244 = vmax.f32 %v202, 0.0
  %v245 = vmax.f32 %v207, 0.0
  %v246 = vmax.f32 %v210, 0.0
  %v247 = vmax.f32 %v215, 0.0
  %v248 = vmax.f32 %v218, 0.0
  %v249 = vmax.f32 %v223, 0.0
  %v250 = vmax.f32 %v226, 0.0
  %v251 = vmax.f32 %v231, 0.0
  %v252 = vmax.f32 %v234, 0.0
  %v253 = vpack.c.bf16 0.0, %v237
  %v254 = vpack.c.bf16 0.0, %v238
  %v255 = vpack.c.bf16 0.0, %v239
  %v256 = vpack.c.bf16 0.0, %v240
  %v257 = vpack.c.bf16 0.0, %v241
  %v258 = vpack.c.bf16 0.0, %v242
  %v259 = vpack.c.bf16 0.0, %v243
  %v260 = vpack.c.bf16 0.0, %v244
  %v261 = vpack.c.bf16 0.0, 0.0
  %v262 = vpack.c.bf16 0.0, %v245
  %v263 = vpack.c.bf16 0.0, %v246
  %v264 = vpack.c.bf16 0.0, %v247
  %v265 = vpack.c.bf16 0.0, %v248
  %v266 = vpack.c.bf16 0.0, %v249
  %v267 = vpack.c.bf16 0.0, %v250
  %v268 = vpack.c.bf16 0.0, %v251
  %v269 = vpack.c.bf16 0.0, %v252
  %v270 = vld [vmem:[%s3] sm:$0xf]
  %v287 = vunpack.c.l.b16 %v253
  %v288 = vunpack.c.h.b16 %v253
  %v289 = vunpack.c.l.b16 %v254
  %v290 = vunpack.c.h.b16 %v254
  %v291 = vunpack.c.l.b16 %v255
  %v292 = vunpack.c.h.b16 %v255
  %v293 = vunpack.c.l.b16 %v256
  %v294 = vunpack.c.h.b16 %v256
  %v295 = vunpack.c.l.b16 %v257
  %v296 = vunpack.c.h.b16 %v257
  %v297 = vunpack.c.l.b16 %v258
  %v298 = vunpack.c.h.b16 %v258
  %v299 = vunpack.c.l.b16 %v259
  %v300 = vunpack.c.h.b16 %v259
  %v301 = vunpack.c.l.b16 %v260
  %v302 = vunpack.c.h.b16 %v260
  %v303 = vunpack.c.l.b16 %v262
  %v304 = vunpack.c.h.b16 %v262
  %v305 = vunpack.c.l.b16 %v263
  %v306 = vunpack.c.h.b16 %v263
  %v307 = vunpack.c.l.b16 %v264
  %v308 = vunpack.c.h.b16 %v264
  %v309 = vunpack.c.l.b16 %v265
  %v310 = vunpack.c.h.b16 %v265
  %v311 = vunpack.c.l.b16 %v266
  %v312 = vunpack.c.h.b16 %v266
  %v313 = vunpack.c.l.b16 %v267
  %v314 = vunpack.c.h.b16 %v267
  %v315 = vunpack.c.l.b16 %v268
  %v316 = vunpack.c.h.b16 %v268
  %v317 = vunpack.c.l.b16 %v269
  %v318 = vunpack.c.h.b16 %v269
  %v319 = vpack.c.b16 %v287, %v287
  %v320 = vpack.c.b16 %v288, %v288
  %v321 = vpack.c.b16 %v289, %v289
  %v322 = vpack.c.b16 %v290, %v290
  %v323 = vpack.c.b16 %v291, %v291
  %v324 = vpack.c.b16 %v292, %v292
  %v325 = vpack.c.b16 %v293, %v293
  %v326 = vpack.c.b16 %v294, %v294
  %v327 = vpack.c.b16 %v295, %v295
  %v328 = vpack.c.b16 %v296, %v296
  %v329 = vpack.c.b16 %v297, %v297
  %v330 = vpack.c.b16 %v298, %v298
  %v331 = vpack.c.b16 %v299, %v299
  %v332 = vpack.c.b16 %v300, %v300
  %v333 = vpack.c.b16 %v301, %v301
  %v334 = vpack.c.b16 %v302, %v302
  %v335 = vpack.c.b16 %v303, %v303
  %v336 = vpack.c.b16 %v304, %v304
  %v337 = vpack.c.b16 %v305, %v305
  %v338 = vpack.c.b16 %v306, %v306
  %v339 = vpack.c.b16 %v307, %v307
  %v340 = vpack.c.b16 %v308, %v308
  %v341 = vpack.c.b16 %v309, %v309
  %v342 = vpack.c.b16 %v310, %v310
  %v343 = vpack.c.b16 %v311, %v311
  %v344 = vpack.c.b16 %v312, %v312
  %v345 = vpack.c.b16 %v313, %v313
  %v346 = vpack.c.b16 %v314, %v314
  %v347 = vpack.c.b16 %v315, %v315
  %v348 = vpack.c.b16 %v316, %v316
  %v349 = vpack.c.b16 %v317, %v317
  %v350 = vpack.c.b16 %v318, %v318
  %vm351 = vsmask.f32 3328
  %vm352 = vsmask.f32 7440
  %vm353 = vmor %vm351, %vm352
  %v355 = vshrl.u32 %v319, 16
  %v357 = vrot.slane %v355, 4
  %v358 = vshll.u32 %v319, 16
  %v360 = vrot.slane %v358, 5
  %v361 = vor.u32 %v357, %v360
  %v362 = vrot.slane %v361, 4
  %v364 = vshll.u32 %v320, 16
  %v366 = vrot.slane %v364, 5
  %v367 = vsel %vm353, %v362, %v366
  %v369 = vshrl.u32 %v321, 16
  %v371 = vrot.slane %v369, 4
  %v372 = vshll.u32 %v321, 16
  %v374 = vrot.slane %v372, 5
  %v375 = vor.u32 %v371, %v374
  %v376 = vrot.slane %v375, 4
  %v378 = vshll.u32 %v322, 16
  %v380 = vrot.slane %v378, 5
  %v381 = vsel %vm353, %v376, %v380
  %v383 = vshrl.u32 %v323, 16
  %v385 = vrot.slane %v383, 4
  %v386 = vshll.u32 %v323, 16
  %v388 = vrot.slane %v386, 5
  %v389 = vor.u32 %v385, %v388
  %v390 = vrot.slane %v389, 4
  %v392 = vshll.u32 %v324, 16
  %v394 = vrot.slane %v392, 5
  %v395 = vsel %vm353, %v390, %v394
  %v397 = vshrl.u32 %v325, 16
  %v399 = vrot.slane %v397, 4
  %v400 = vshll.u32 %v325, 16
  %v402 = vrot.slane %v400, 5
  %v403 = vor.u32 %v399, %v402
  %v404 = vrot.slane %v403, 4
  %v406 = vshll.u32 %v326, 16
  %v408 = vrot.slane %v406, 5
  %v409 = vsel %vm353, %v404, %v408
  %v411 = vshrl.u32 %v327, 16
  %v413 = vrot.slane %v411, 4
  %v414 = vshll.u32 %v327, 16
  %v416 = vrot.slane %v414, 5
  %v417 = vor.u32 %v413, %v416
  %v418 = vrot.slane %v417, 4
  %v420 = vshll.u32 %v328, 16
  %v422 = vrot.slane %v420, 5
  %v423 = vsel %vm353, %v418, %v422
  %v425 = vshrl.u32 %v329, 16
  %v427 = vrot.slane %v425, 4
  %v428 = vshll.u32 %v329, 16
  %v430 = vrot.slane %v428, 5
  %v431 = vor.u32 %v427, %v430
  %v432 = vrot.slane %v431, 4
  %v434 = vshll.u32 %v330, 16
  %v436 = vrot.slane %v434, 5
  %v437 = vsel %vm353, %v432, %v436
  %v439 = vshrl.u32 %v331, 16
  %v441 = vrot.slane %v439, 4
  %v442 = vshll.u32 %v331, 16
  %v444 = vrot.slane %v442, 5
  %v445 = vor.u32 %v441, %v444
  %v446 = vrot.slane %v445, 4
  %v448 = vshll.u32 %v332, 16
  %v450 = vrot.slane %v448, 5
  %v451 = vsel %vm353, %v446, %v450
  %v453 = vshrl.u32 %v333, 16
  %v455 = vrot.slane %v453, 4
  %v456 = vshll.u32 %v333, 16
  %v458 = vrot.slane %v456, 5
  %v459 = vor.u32 %v455, %v458
  %v460 = vrot.slane %v459, 4
  %v462 = vshll.u32 %v334, 16
  %v464 = vrot.slane %v462, 5
  %v465 = vsel %vm353, %v460, %v464
  %v467 = vshrl.u32 %v335, 16
  %v469 = vrot.slane %v467, 4
  %v470 = vshll.u32 %v335, 16
  %v472 = vrot.slane %v470, 5
  %v473 = vor.u32 %v469, %v472
  %v474 = vrot.slane %v473, 4
  %v476 = vshll.u32 %v336, 16
  %v478 = vrot.slane %v476, 5
  %v479 = vsel %vm353, %v474, %v478
  %v481 = vshrl.u32 %v337, 16
  %v483 = vrot.slane %v481, 4
  %v484 = vshll.u32 %v337, 16
  %v486 = vrot.slane %v484, 5
  %v487 = vor.u32 %v483, %v486
  %v488 = vrot.slane %v487, 4
  %v490 = vshll.u32 %v338, 16
  %v492 = vrot.slane %v490, 5
  %v493 = vsel %vm353, %v488, %v492
  %v495 = vshrl.u32 %v339, 16
  %v497 = vrot.slane %v495, 4
  %v498 = vshll.u32 %v339, 16
  %v500 = vrot.slane %v498, 5
  %v501 = vor.u32 %v497, %v500
  %v502 = vrot.slane %v501, 4
  %v504 = vshll.u32 %v340, 16
  %v506 = vrot.slane %v504, 5
  %v507 = vsel %vm353, %v502, %v506
  %v509 = vshrl.u32 %v341, 16
  %v511 = vrot.slane %v509, 4
  %v512 = vshll.u32 %v341, 16
  %v514 = vrot.slane %v512, 5
  %v515 = vor.u32 %v511, %v514
  %v516 = vrot.slane %v515, 4
  %v518 = vshll.u32 %v342, 16
  %v520 = vrot.slane %v518, 5
  %v521 = vsel %vm353, %v516, %v520
  %v523 = vshrl.u32 %v343, 16
  %v525 = vrot.slane %v523, 4
  %v526 = vshll.u32 %v343, 16
  %v528 = vrot.slane %v526, 5
  %v529 = vor.u32 %v525, %v528
  %v530 = vrot.slane %v529, 4
  %v532 = vshll.u32 %v344, 16
  %v534 = vrot.slane %v532, 5
  %v535 = vsel %vm353, %v530, %v534
  %v537 = vshrl.u32 %v345, 16
  %v539 = vrot.slane %v537, 4
  %v540 = vshll.u32 %v345, 16
  %v542 = vrot.slane %v540, 5
  %v543 = vor.u32 %v539, %v542
  %v544 = vrot.slane %v543, 4
  %v546 = vshll.u32 %v346, 16
  %v548 = vrot.slane %v546, 5
  %v549 = vsel %vm353, %v544, %v548
  %v551 = vshrl.u32 %v347, 16
  %v553 = vrot.slane %v551, 4
  %v554 = vshll.u32 %v347, 16
  %v556 = vrot.slane %v554, 5
  %v557 = vor.u32 %v553, %v556
  %v558 = vrot.slane %v557, 4
  %v560 = vshll.u32 %v348, 16
  %v562 = vrot.slane %v560, 5
  %v563 = vsel %vm353, %v558, %v562
  %v565 = vshrl.u32 %v349, 16
  %v567 = vrot.slane %v565, 4
  %v568 = vshll.u32 %v349, 16
  %v570 = vrot.slane %v568, 5
  %v571 = vor.u32 %v567, %v570
  %v572 = vrot.slane %v571, 4
  %v574 = vshll.u32 %v350, 16
  %v576 = vrot.slane %v574, 5
  %v577 = vsel %vm353, %v572, %v576
  %s578 = scalar_lea.vmem %s3, 4
  %v579 = vld [vmem:[%s578] sm:$0xf]
  %v580 = vunpack.c.l.b16 %v367
  %v581 = vunpack.c.l.b16 %v381
  %v582 = vunpack.c.l.b16 %v395
  %v583 = vunpack.c.l.b16 %v409
  %v584 = vunpack.c.l.b16 %v423
  %v585 = vunpack.c.l.b16 %v437
  %v586 = vunpack.c.l.b16 %v451
  %v587 = vunpack.c.l.b16 %v465
  %v588 = vunpack.c.l.b16 %v479
  %v589 = vunpack.c.l.b16 %v493
  %v590 = vunpack.c.l.b16 %v507
  %v591 = vunpack.c.l.b16 %v521
  %v592 = vunpack.c.l.b16 %v535
  %v593 = vunpack.c.l.b16 %v549
  %v594 = vunpack.c.l.b16 %v563
  %v595 = vunpack.c.l.b16 %v577
  %v596 = vpack.c.b16 %v581, %v580
  %v597 = vpack.c.b16 %v583, %v582
  %v598 = vpack.c.b16 %v585, %v584
  %v599 = vpack.c.b16 %v587, %v586
  %v600 = vpack.c.b16 %v589, %v588
  %v601 = vpack.c.b16 %v591, %v590
  %v602 = vpack.c.b16 %v593, %v592
  %v603 = vpack.c.b16 %v595, %v594
  %vm604 = vcmask 64512
  %v606 = vsel %vm604, %v596, 0
  %v609 = vsel %vm604, %v597, 0
  %v612 = vsel %vm604, %v598, 0
  %v615 = vsel %vm604, %v599, 0
  %v618 = vsel %vm604, %v600, 0
  %v621 = vsel %vm604, %v601, 0
  %v624 = vsel %vm604, %v602, 0
  %v627 = vsel %vm604, %v603, 0
  %vm629 = vcmask 1043456
  %v631 = vsel %vm629, %v579, 0
  %633 = vmatprep.subr.bf16.mxu0 0
  %634 = vmatpush1.bf16.msra.mxu0 %v631
  %635 = vmatprep.subr.bf16.mxu0 0
  %636 = vmatpush1.bf16.msra.mxu0 0
  %637 = vmatprep.subr.bf16.mxu0 0
  %638 = vmatpush1.bf16.msra.mxu0 0
  %639 = vmatprep.subr.bf16.mxu0 0
  %640 = vmatpush1.bf16.msra.mxu0 0
  %641 = vmatprep.subr.bf16.mxu0 0
  %642 = vmatpush1.bf16.msra.mxu0 0
  %643 = vmatprep.subr.bf16.mxu0 0
  %644 = vmatpush1.bf16.msra.mxu0 0
  %645 = vmatprep.subr.bf16.mxu0 0
  %646 = vmatpush1.bf16.msra.mxu0 0
  %647 = vmatprep.subr.bf16.mxu0 0
  %648 = vmatpush1.bf16.msra.mxu0 0
  %649 = vmatprep.subr.bf16.mxu0 0
  %650 = vmatpush1.bf16.msra.mxu0 0
  %651 = vmatprep.subr.bf16.mxu0 0
  %652 = vmatpush1.bf16.msra.mxu0 0
  %653 = vmatprep.subr.bf16.mxu0 0
  %654 = vmatpush1.bf16.msra.mxu0 0
  %655 = vmatprep.subr.bf16.mxu0 0
  %656 = vmatpush1.bf16.msra.mxu0 0
  %657 = vmatprep.subr.bf16.mxu0 0
  %658 = vmatpush1.bf16.msra.mxu0 0
  %659 = vmatprep.subr.bf16.mxu0 0
  %660 = vmatpush1.bf16.msra.mxu0 0
  %661 = vmatprep.subr.bf16.mxu0 0
  %662 = vmatpush1.bf16.msra.mxu0 0
  %663 = vmatprep.subr.bf16.mxu0 0
  %664 = vmatpush1.bf16.msra.mxu0 0
  %665 = vmatprep.mubr.bf16.mxu0 0
  %666 = vmatmul.mubr.bf16.gmra.mrb[0].mxu0 %v606
  %v667 = vpop.f32.mrb[0].mxu0
  %v668 = vadd.f32 0.0, %v667
  %v669 = vpop.f32.mrb[0].mxu0
  %v670 = vpop.f32.mrb[0].mxu0
  %v671 = vadd.f32 0.0, %v670
  %v672 = vpop.f32.mrb[0].mxu0
  %673 = vmatprep.mubr.bf16.mxu0 0
  %674 = vmatmul.mubr.bf16.gmra.mrb[0].mxu0 %v609
  %v675 = vpop.f32.mrb[0].mxu0
  %v676 = vadd.f32 0.0, %v675
  %v677 = vpop.f32.mrb[0].mxu0
  %v678 = vpop.f32.mrb[0].mxu0
  %v679 = vadd.f32 0.0, %v678
  %v680 = vpop.f32.mrb[0].mxu0
  %681 = vmatprep.mubr.bf16.mxu0 0
  %682 = vmatmul.mubr.bf16.gmra.mrb[0].mxu0 %v612
  %v683 = vpop.f32.mrb[0].mxu0
  %v684 = vadd.f32 0.0, %v683
  %v685 = vpop.f32.mrb[0].mxu0
  %v686 = vpop.f32.mrb[0].mxu0
  %v687 = vadd.f32 0.0, %v686
  %v688 = vpop.f32.mrb[0].mxu0
  %689 = vmatprep.mubr.bf16.mxu0 0
  %690 = vmatmul.mubr.bf16.gmra.mrb[0].mxu0 %v615
  %v691 = vpop.f32.mrb[0].mxu0
  %v692 = vadd.f32 0.0, %v691
  %v693 = vpop.f32.mrb[0].mxu0
  %v694 = vpop.f32.mrb[0].mxu0
  %v695 = vadd.f32 0.0, %v694
  %v696 = vpop.f32.mrb[0].mxu0
  %697 = vmatprep.mubr.bf16.mxu0 0
  %698 = vmatmul.mubr.bf16.gmra.mrb[0].mxu0 %v618
  %v699 = vpop.f32.mrb[0].mxu0
  %v700 = vadd.f32 0.0, %v699
  %v701 = vpop.f32.mrb[0].mxu0
  %v702 = vpop.f32.mrb[0].mxu0
  %v703 = vadd.f32 0.0, %v702
  %v704 = vpop.f32.mrb[0].mxu0
  %705 = vmatprep.mubr.bf16.mxu0 0
  %706 = vmatmul.mubr.bf16.gmra.mrb[0].mxu0 %v621
  %v707 = vpop.f32.mrb[0].mxu0
  %v708 = vadd.f32 0.0, %v707
  %v709 = vpop.f32.mrb[0].mxu0
  %v710 = vpop.f32.mrb[0].mxu0
  %v711 = vadd.f32 0.0, %v710
  %v712 = vpop.f32.mrb[0].mxu0
  %713 = vmatprep.mubr.bf16.mxu0 0
  %714 = vmatmul.mubr.bf16.gmra.mrb[0].mxu0 %v624
  %v715 = vpop.f32.mrb[0].mxu0
  %v716 = vadd.f32 0.0, %v715
  %v717 = vpop.f32.mrb[0].mxu0
  %v718 = vpop.f32.mrb[0].mxu0
  %v719 = vadd.f32 0.0, %v718
  %v720 = vpop.f32.mrb[0].mxu0
  %721 = vmatprep.mubr.bf16.mxu0 0
  %722 = vmatmul.mubr.bf16.gmra.mrb[0].mxu0 %v627
  %v723 = vpop.f32.mrb[0].mxu0
  %v724 = vadd.f32 0.0, %v723
  %v725 = vpop.f32.mrb[0].mxu0
  %v726 = vpop.f32.mrb[0].mxu0
  %v727 = vadd.f32 0.0, %v726
  %v728 = vpop.f32.mrb[0].mxu0
  %729 = vdwg.mxu0
  %v730 = vpack.c.b16 %v289, %v287
  %v731 = vpack.c.b16 %v293, %v291
  %v732 = vpack.c.b16 %v297, %v295
  %v733 = vpack.c.b16 %v301, %v299
  %v734 = vpack.c.b16 %v305, %v303
  %v735 = vpack.c.b16 %v309, %v307
  %v736 = vpack.c.b16 %v313, %v311
  %v737 = vpack.c.b16 %v317, %v315
  %v739 = vsel %vm604, %v730, 0
  %v742 = vsel %vm604, %v731, 0
  %v745 = vsel %vm604, %v732, 0
  %v748 = vsel %vm604, %v733, 0
  %v751 = vsel %vm604, %v734, 0
  %v754 = vsel %vm604, %v735, 0
  %v757 = vsel %vm604, %v736, 0
  %v760 = vsel %vm604, %v737, 0
  %v763 = vsel %vm629, %v270, 0
  %765 = vmatprep.subr.bf16.mxu0 0
  %766 = vmatpush1.bf16.msra.mxu0 %v763
  %767 = vmatprep.subr.bf16.mxu0 0
  %768 = vmatpush1.bf16.msra.mxu0 0
  %769 = vmatprep.subr.bf16.mxu0 0
  %770 = vmatpush1.bf16.msra.mxu0 0
  %771 = vmatprep.subr.bf16.mxu0 0
  %772 = vmatpush1.bf16.msra.mxu0 0
  %773 = vmatprep.subr.bf16.mxu0 0
  %774 = vmatpush1.bf16.msra.mxu0 0
  %775 = vmatprep.subr.bf16.mxu0 0
  %776 = vmatpush1.bf16.msra.mxu0 0
  %777 = vmatprep.subr.bf16.mxu0 0
  %778 = vmatpush1.bf16.msra.mxu0 0
  %779 = vmatprep.subr.bf16.mxu0 0
  %780 = vmatpush1.bf16.msra.mxu0 0
  %781 = vmatprep.subr.bf16.mxu0 0
  %782 = vmatpush1.bf16.msra.mxu0 0
  %783 = vmatprep.subr.bf16.mxu0 0
  %784 = vmatpush1.bf16.msra.mxu0 0
  %785 = vmatprep.subr.bf16.mxu0 0
  %786 = vmatpush1.bf16.msra.mxu0 0
  %787 = vmatprep.subr.bf16.mxu0 0
  %788 = vmatpush1.bf16.msra.mxu0 0
  %789 = vmatprep.subr.bf16.mxu0 0
  %790 = vmatpush1.bf16.msra.mxu0 0
  %791 = vmatprep.subr.bf16.mxu0 0
  %792 = vmatpush1.bf16.msra.mxu0 0
  %793 = vmatprep.subr.bf16.mxu0 0
  %794 = vmatpush1.bf16.msra.mxu0 0
  %795 = vmatprep.subr.bf16.mxu0 0
  %796 = vmatpush1.bf16.msra.mxu0 0
  %797 = vmatprep.mubr.bf16.mxu0 0
  %798 = vmatmul.mubr.bf16.gmra.mrb[0].mxu0 %v739
  %v799 = vpop.f32.mrb[0].mxu0
  %v800 = vadd.f32 %v668, %v799
  %v801 = vpop.f32.mrb[0].mxu0
  %v802 = vpop.f32.mrb[0].mxu0
  %v803 = vadd.f32 %v671, %v802
  %v804 = vpop.f32.mrb[0].mxu0
  %805 = vmatprep.mubr.bf16.mxu0 0
  %806 = vmatmul.mubr.bf16.gmra.mrb[0].mxu0 %v742
  %v807 = vpop.f32.mrb[0].mxu0
  %v808 = vadd.f32 %v676, %v807
  %v809 = vpop.f32.mrb[0].mxu0
  %v810 = vpop.f32.mrb[0].mxu0
  %v811 = vadd.f32 %v679, %v810
  %v812 = vpop.f32.mrb[0].mxu0
  %813 = vmatprep.mubr.bf16.mxu0 0
  %814 = vmatmul.mubr.bf16.gmra.mrb[0].mxu0 %v745
  %v815 = vpop.f32.mrb[0].mxu0
  %v816 = vadd.f32 %v684, %v815
  %v817 = vpop.f32.mrb[0].mxu0
  %v818 = vpop.f32.mrb[0].mxu0
  %v819 = vadd.f32 %v687, %v818
  %v820 = vpop.f32.mrb[0].mxu0
  %821 = vmatprep.mubr.bf16.mxu0 0
  %822 = vmatmul.mubr.bf16.gmra.mrb[0].mxu0 %v748
  %v823 = vpop.f32.mrb[0].mxu0
  %v824 = vadd.f32 %v692, %v823
  %v825 = vpop.f32.mrb[0].mxu0
  %v826 = vpop.f32.mrb[0].mxu0
  %v827 = vadd.f32 %v695, %v826
  %v828 = vpop.f32.mrb[0].mxu0
  %829 = vmatprep.mubr.bf16.mxu0 0
  %830 = vmatmul.mubr.bf16.gmra.mrb[0].mxu0 %v751
  %v831 = vpop.f32.mrb[0].mxu0
  %v832 = vadd.f32 %v700, %v831
  %v833 = vpop.f32.mrb[0].mxu0
  %v834 = vpop.f32.mrb[0].mxu0
  %v835 = vadd.f32 %v703, %v834
  %v836 = vpop.f32.mrb[0].mxu0
  %837 = vmatprep.mubr.bf16.mxu0 0
  %838 = vmatmul.mubr.bf16.gmra.mrb[0].mxu0 %v754
  %v839 = vpop.f32.mrb[0].mxu0
  %v840 = vadd.f32 %v708, %v839
  %v841 = vpop.f32.mrb[0].mxu0
  %v842 = vpop.f32.mrb[0].mxu0
  %v843 = vadd.f32 %v711, %v842
  %v844 = vpop.f32.mrb[0].mxu0
  %845 = vmatprep.mubr.bf16.mxu0 0
  %846 = vmatmul.mubr.bf16.gmra.mrb[0].mxu0 %v757
  %v847 = vpop.f32.mrb[0].mxu0
  %v848 = vadd.f32 %v716, %v847
  %v849 = vpop.f32.mrb[0].mxu0
  %v850 = vpop.f32.mrb[0].mxu0
  %v851 = vadd.f32 %v719, %v850
  %v852 = vpop.f32.mrb[0].mxu0
  %853 = vmatprep.mubr.bf16.mxu0 0
  %854 = vmatmul.mubr.bf16.gmra.mrb[0].mxu0 %v760
  %v855 = vpop.f32.mrb[0].mxu0
  %v856 = vadd.f32 %v724, %v855
  %v857 = vpop.f32.mrb[0].mxu0
  %v858 = vpop.f32.mrb[0].mxu0
  %v859 = vadd.f32 %v727, %v858
  %v860 = vpop.f32.mrb[0].mxu0
  %861 = vdwg.mxu0
  %s862 = scalar_lea.vmem %s3, 8
  %v863 = vld [vmem:[%s862] sm:$0xf]
  %v865 = vunpack.c.l.b16 %v261
  %v866 = vpack.c.b16 %v291, %v289
  %v867 = vpack.c.b16 %v295, %v293
  %v868 = vpack.c.b16 %v299, %v297
  %v869 = vpack.c.b16 %v865, %v301
  %v870 = vpack.c.b16 %v307, %v305
  %v871 = vpack.c.b16 %v311, %v309
  %v872 = vpack.c.b16 %v315, %v313
  %v873 = vpack.c.b16 %v865, %v317
  %v875 = vsel %vm604, %v866, 0
  %v878 = vsel %vm604, %v867, 0
  %v881 = vsel %vm604, %v868, 0
  %v884 = vsel %vm604, %v869, 0
  %v887 = vsel %vm604, %v870, 0
  %v890 = vsel %vm604, %v871, 0
  %v893 = vsel %vm604, %v872, 0
  %v896 = vsel %vm604, %v873, 0
  %v899 = vsel %vm629, %v863, 0
  %901 = vmatprep.subr.bf16.mxu0 0
  %902 = vmatpush1.bf16.msra.mxu0 %v899
  %903 = vmatprep.subr.bf16.mxu0 0
  %904 = vmatpush1.bf16.msra.mxu0 0
  %905 = vmatprep.subr.bf16.mxu0 0
  %906 = vmatpush1.bf16.msra.mxu0 0
  %907 = vmatprep.subr.bf16.mxu0 0
  %908 = vmatpush1.bf16.msra.mxu0 0
  %909 = vmatprep.subr.bf16.mxu0 0
  %910 = vmatpush1.bf16.msra.mxu0 0
  %911 = vmatprep.subr.bf16.mxu0 0
  %912 = vmatpush1.bf16.msra.mxu0 0
  %913 = vmatprep.subr.bf16.mxu0 0
  %914 = vmatpush1.bf16.msra.mxu0 0
  %915 = vmatprep.subr.bf16.mxu0 0
  %916 = vmatpush1.bf16.msra.mxu0 0
  %917 = vmatprep.subr.bf16.mxu0 0
  %918 = vmatpush1.bf16.msra.mxu0 0
  %919 = vmatprep.subr.bf16.mxu0 0
  %920 = vmatpush1.bf16.msra.mxu0 0
  %921 = vmatprep.subr.bf16.mxu0 0
  %922 = vmatpush1.bf16.msra.mxu0 0
  %923 = vmatprep.subr.bf16.mxu0 0
  %924 = vmatpush1.bf16.msra.mxu0 0
  %925 = vmatprep.subr.bf16.mxu0 0
  %926 = vmatpush1.bf16.msra.mxu0 0
  %927 = vmatprep.subr.bf16.mxu0 0
  %928 = vmatpush1.bf16.msra.mxu0 0
  %929 = vmatprep.subr.bf16.mxu0 0
  %930 = vmatpush1.bf16.msra.mxu0 0
  %931 = vmatprep.subr.bf16.mxu0 0
  %932 = vmatpush1.bf16.msra.mxu0 0
  %933 = vmatprep.mubr.bf16.mxu0 0
  %934 = vmatmul.mubr.bf16.gmra.mrb[0].mxu0 %v875
  %v935 = vpop.f32.mrb[0].mxu0
  %v936 = vadd.f32 0.0, %v935
  %v937 = vpop.f32.mrb[0].mxu0
  %v938 = vpop.f32.mrb[0].mxu0
  %v939 = vadd.f32 0.0, %v938
  %v940 = vpop.f32.mrb[0].mxu0
  %941 = vmatprep.mubr.bf16.mxu0 0
  %942 = vmatmul.mubr.bf16.gmra.mrb[0].mxu0 %v878
  %v943 = vpop.f32.mrb[0].mxu0
  %v944 = vadd.f32 0.0, %v943
  %v945 = vpop.f32.mrb[0].mxu0
  %v946 = vpop.f32.mrb[0].mxu0
  %v947 = vadd.f32 0.0, %v946
  %v948 = vpop.f32.mrb[0].mxu0
  %949 = vmatprep.mubr.bf16.mxu0 0
  %950 = vmatmul.mubr.bf16.gmra.mrb[0].mxu0 %v881
  %v951 = vpop.f32.mrb[0].mxu0
  %v952 = vadd.f32 0.0, %v951
  %v953 = vpop.f32.mrb[0].mxu0
  %v954 = vpop.f32.mrb[0].mxu0
  %v955 = vadd.f32 0.0, %v954
  %v956 = vpop.f32.mrb[0].mxu0
  %957 = vmatprep.mubr.bf16.mxu0 0
  %958 = vmatmul.mubr.bf16.gmra.mrb[0].mxu0 %v884
  %v959 = vpop.f32.mrb[0].mxu0
  %v960 = vadd.f32 0.0, %v959
  %v961 = vpop.f32.mrb[0].mxu0
  %v962 = vpop.f32.mrb[0].mxu0
  %v963 = vadd.f32 0.0, %v962
  %v964 = vpop.f32.mrb[0].mxu0
  %965 = vmatprep.mubr.bf16.mxu0 0
  %966 = vmatmul.mubr.bf16.gmra.mrb[0].mxu0 %v887
  %v967 = vpop.f32.mrb[0].mxu0
  %v968 = vadd.f32 0.0, %v967
  %v969 = vpop.f32.mrb[0].mxu0
  %v970 = vpop.f32.mrb[0].mxu0
  %v971 = vadd.f32 0.0, %v970
  %v972 = vpop.f32.mrb[0].mxu0
  %973 = vmatprep.mubr.bf16.mxu0 0
  %974 = vmatmul.mubr.bf16.gmra.mrb[0].mxu0 %v890
  %v975 = vpop.f32.mrb[0].mxu0
  %v976 = vadd.f32 0.0, %v975
  %v977 = vpop.f32.mrb[0].mxu0
  %v978 = vpop.f32.mrb[0].mxu0
  %v979 = vadd.f32 0.0, %v978
  %v980 = vpop.f32.mrb[0].mxu0
  %981 = vmatprep.mubr.bf16.mxu0 0
  %982 = vmatmul.mubr.bf16.gmra.mrb[0].mxu0 %v893
  %v983 = vpop.f32.mrb[0].mxu0
  %v984 = vadd.f32 0.0, %v983
  %v985 = vpop.f32.mrb[0].mxu0
  %v986 = vpop.f32.mrb[0].mxu0
  %v987 = vadd.f32 0.0, %v986
  %v988 = vpop.f32.mrb[0].mxu0
  %989 = vmatprep.mubr.bf16.mxu0 0
  %990 = vmatmul.mubr.bf16.gmra.mrb[0].mxu0 %v896
  %v991 = vpop.f32.mrb[0].mxu0
  %v992 = vadd.f32 0.0, %v991
  %v993 = vpop.f32.mrb[0].mxu0
  %v994 = vpop.f32.mrb[0].mxu0
  %v995 = vadd.f32 0.0, %v994
  %v996 = vpop.f32.mrb[0].mxu0
  %997 = vdwg.mxu0
  %v998 = vadd.f32 %v800, %v936
  %v999 = vadd.f32 %v803, %v939
  %v1000 = vadd.f32 %v808, %v944
  %v1001 = vadd.f32 %v811, %v947
  %v1002 = vadd.f32 %v816, %v952
  %v1003 = vadd.f32 %v819, %v955
  %v1004 = vadd.f32 %v824, %v960
  %v1005 = vadd.f32 %v827, %v963
  %v1006 = vadd.f32 %v832, %v968
  %v1007 = vadd.f32 %v835, %v971
  %v1008 = vadd.f32 %v840, %v976
  %v1009 = vadd.f32 %v843, %v979
  %v1010 = vadd.f32 %v848, %v984
  %v1011 = vadd.f32 %v851, %v987
  %v1012 = vadd.f32 %v856, %v992
  %v1013 = vadd.f32 %v859, %v995
  %v1014 = vunpack.c.h.b16 %v261
  %v1015 = vpack.c.b16 %v865, %v865
  %v1016 = vpack.c.b16 %v1014, %v1014
  %v1018 = vshrl.u32 %v1015, 16
  %v1020 = vrot.slane %v1018, 4
  %v1021 = vshll.u32 %v1015, 16
  %v1023 = vrot.slane %v1021, 5
  %v1024 = vor.u32 %v1020, %v1023
  %v1025 = vrot.slane %v1024, 4
  %v1027 = vshll.u32 %v1016, 16
  %v1029 = vrot.slane %v1027, 5
  %v1030 = vsel %vm353, %v1025, %v1029
  %s1031 = scalar_lea.vmem %s3, 12
  %v1032 = vld [vmem:[%s1031] sm:$0xf]
  %v1033 = vunpack.c.l.b16 %v1030
  %v1034 = vpack.c.b16 %v582, %v581
  %v1035 = vpack.c.b16 %v584, %v583
  %v1036 = vpack.c.b16 %v586, %v585
  %v1037 = vpack.c.b16 %v1033, %v587
  %v1038 = vpack.c.b16 %v590, %v589
  %v1039 = vpack.c.b16 %v592, %v591
  %v1040 = vpack.c.b16 %v594, %v593
  %v1041 = vpack.c.b16 %v1033, %v595
  %v1043 = vsel %vm604, %v1034, 0
  %v1046 = vsel %vm604, %v1035, 0
  %v1049 = vsel %vm604, %v1036, 0
  %v1052 = vsel %vm604, %v1037, 0
  %v1055 = vsel %vm604, %v1038, 0
  %v1058 = vsel %vm604, %v1039, 0
  %v1061 = vsel %vm604, %v1040, 0
  %v1064 = vsel %vm604, %v1041, 0
  %v1067 = vsel %vm629, %v1032, 0
  %1069 = vmatprep.subr.bf16.mxu0 0
  %1070 = vmatpush1.bf16.msra.mxu0 %v1067
  %1071 = vmatprep.subr.bf16.mxu0 0
  %1072 = vmatpush1.bf16.msra.mxu0 0
  %1073 = vmatprep.subr.bf16.mxu0 0
  %1074 = vmatpush1.bf16.msra.mxu0 0
  %1075 = vmatprep.subr.bf16.mxu0 0
  %1076 = vmatpush1.bf16.msra.mxu0 0
  %1077 = vmatprep.subr.bf16.mxu0 0
  %1078 = vmatpush1.bf16.msra.mxu0 0
  %1079 = vmatprep.subr.bf16.mxu0 0
  %1080 = vmatpush1.bf16.msra.mxu0 0
  %1081 = vmatprep.subr.bf16.mxu0 0
  %1082 = vmatpush1.bf16.msra.mxu0 0
  %1083 = vmatprep.subr.bf16.mxu0 0
  %1084 = vmatpush1.bf16.msra.mxu0 0
  %1085 = vmatprep.subr.bf16.mxu0 0
  %1086 = vmatpush1.bf16.msra.mxu0 0
  %1087 = vmatprep.subr.bf16.mxu0 0
  %1088 = vmatpush1.bf16.msra.mxu0 0
  %1089 = vmatprep.subr.bf16.mxu0 0
  %1090 = vmatpush1.bf16.msra.mxu0 0
  %1091 = vmatprep.subr.bf16.mxu0 0
  %1092 = vmatpush1.bf16.msra.mxu0 0
  %1093 = vmatprep.subr.bf16.mxu0 0
  %1094 = vmatpush1.bf16.msra.mxu0 0
  %1095 = vmatprep.subr.bf16.mxu0 0
  %1096 = vmatpush1.bf16.msra.mxu0 0
  %1097 = vmatprep.subr.bf16.mxu0 0
  %1098 = vmatpush1.bf16.msra.mxu0 0
  %1099 = vmatprep.subr.bf16.mxu0 0
  %1100 = vmatpush1.bf16.msra.mxu0 0
  %1101 = vmatprep.mubr.bf16.mxu0 0
  %1102 = vmatmul.mubr.bf16.gmra.mrb[0].mxu0 %v1043
  %v1103 = vpop.f32.mrb[0].mxu0
  %v1104 = vadd.f32 0.0, %v1103
  %v1105 = vpop.f32.mrb[0].mxu0
  %v1106 = vpop.f32.mrb[0].mxu0
  %v1107 = vadd.f32 0.0, %v1106
  %v1108 = vpop.f32.mrb[0].mxu0
  %1109 = vmatprep.mubr.bf16.mxu0 0
  %1110 = vmatmul.mubr.bf16.gmra.mrb[0].mxu0 %v1046
  %v1111 = vpop.f32.mrb[0].mxu0
  %v1112 = vadd.f32 0.0, %v1111
  %v1113 = vpop.f32.mrb[0].mxu0
  %v1114 = vpop.f32.mrb[0].mxu0
  %v1115 = vadd.f32 0.0, %v1114
  %v1116 = vpop.f32.mrb[0].mxu0
  %1117 = vmatprep.mubr.bf16.mxu0 0
  %1118 = vmatmul.mubr.bf16.gmra.mrb[0].mxu0 %v1049
  %v1119 = vpop.f32.mrb[0].mxu0
  %v1120 = vadd.f32 0.0, %v1119
  %v1121 = vpop.f32.mrb[0].mxu0
  %v1122 = vpop.f32.mrb[0].mxu0
  %v1123 = vadd.f32 0.0, %v1122
  %v1124 = vpop.f32.mrb[0].mxu0
  %1125 = vmatprep.mubr.bf16.mxu0 0
  %1126 = vmatmul.mubr.bf16.gmra.mrb[0].mxu0 %v1052
  %v1127 = vpop.f32.mrb[0].mxu0
  %v1128 = vadd.f32 0.0, %v1127
  %v1129 = vpop.f32.mrb[0].mxu0
  %v1130 = vpop.f32.mrb[0].mxu0
  %v1131 = vadd.f32 0.0, %v1130
  %v1132 = vpop.f32.mrb[0].mxu0
  %1133 = vmatprep.mubr.bf16.mxu0 0
  %1134 = vmatmul.mubr.bf16.gmra.mrb[0].mxu0 %v1055
  %v1135 = vpop.f32.mrb[0].mxu0
  %v1136 = vadd.f32 0.0, %v1135
  %v1137 = vpop.f32.mrb[0].mxu0
  %v1138 = vpop.f32.mrb[0].mxu0
  %v1139 = vadd.f32 0.0, %v1138
  %v1140 = vpop.f32.mrb[0].mxu0
  %1141 = vmatprep.mubr.bf16.mxu0 0
  %1142 = vmatmul.mubr.bf16.gmra.mrb[0].mxu0 %v1058
  %v1143 = vpop.f32.mrb[0].mxu0
  %v1144 = vadd.f32 0.0, %v1143
  %v1145 = vpop.f32.mrb[0].mxu0
  %v1146 = vpop.f32.mrb[0].mxu0
  %v1147 = vadd.f32 0.0, %v1146
  %v1148 = vpop.f32.mrb[0].mxu0
  %1149 = vmatprep.mubr.bf16.mxu0 0
  %1150 = vmatmul.mubr.bf16.gmra.mrb[0].mxu0 %v1061
  %v1151 = vpop.f32.mrb[0].mxu0
  %v1152 = vadd.f32 0.0, %v1151
  %v1153 = vpop.f32.mrb[0].mxu0
  %v1154 = vpop.f32.mrb[0].mxu0
  %v1155 = vadd.f32 0.0, %v1154
  %v1156 = vpop.f32.mrb[0].mxu0
  %1157 = vmatprep.mubr.bf16.mxu0 0
  %1158 = vmatmul.mubr.bf16.gmra.mrb[0].mxu0 %v1064
  %v1159 = vpop.f32.mrb[0].mxu0
  %v1160 = vadd.f32 0.0, %v1159
  %v1161 = vpop.f32.mrb[0].mxu0
  %v1162 = vpop.f32.mrb[0].mxu0
  %v1163 = vadd.f32 0.0, %v1162
  %v1164 = vpop.f32.mrb[0].mxu0
  %1165 = vdwg.mxu0
  %v1166 = vadd.f32 %v998, %v1104
  %v1167 = vadd.f32 %v999, %v1107
  %v1168 = vadd.f32 %v1000, %v1112
  %v1169 = vadd.f32 %v1001, %v1115
  %v1170 = vadd.f32 %v1002, %v1120
  %v1171 = vadd.f32 %v1003, %v1123
  %v1172 = vadd.f32 %v1004, %v1128
  %v1173 = vadd.f32 %v1005, %v1131
  %v1174 = vadd.f32 %v1006, %v1136
  %v1175 = vadd.f32 %v1007, %v1139
  %v1176 = vadd.f32 %v1008, %v1144
  %v1177 = vadd.f32 %v1009, %v1147
  %v1178 = vadd.f32 %v1010, %v1152
  %v1179 = vadd.f32 %v1011, %v1155
  %v1180 = vadd.f32 %v1012, %v1160
  %v1181 = vadd.f32 %v1013, %v1163
  %v1182 = vld [vmem:[%s4] sm:$0xff]
  %v1183 = vld [vmem:[%s4 + $0x8] sm:$0xff]
  %v1184 = vld [vmem:[%s4 + $0x10] sm:$0xff]
  %v1185 = vld [vmem:[%s4 + $0x18] sm:$0xff]
  %v1186 = vld [vmem:[%s4 + $0x20] sm:$0xff]
  %v1187 = vld [vmem:[%s4 + $0x28] sm:$0xff]
  %v1188 = vld [vmem:[%s4 + $0x30] sm:$0xff]
  %v1189 = vld [vmem:[%s4 + $0x38] sm:$0xff]
  %v1190 = vld [vmem:[%s4 + $0x40] sm:$0xff]
  %v1191 = vld [vmem:[%s4 + $0x48] sm:$0xff]
  %v1192 = vld [vmem:[%s4 + $0x50] sm:$0xff]
  %v1193 = vld [vmem:[%s4 + $0x58] sm:$0xff]
  %v1194 = vld [vmem:[%s4 + $0x60] sm:$0xff]
  %v1195 = vld [vmem:[%s4 + $0x68] sm:$0xff]
  %v1196 = vld [vmem:[%s4 + $0x70] sm:$0xff]
  %v1197 = vld [vmem:[%s4 + $0x78] sm:$0xff]
  %s1198 = scalar_lea.vmem %s4, 128
  %v1199 = vld [vmem:[%s1198] sm:$0xff]
  %v1200 = vld [vmem:[%s1198 + $0x8] sm:$0xff]
  %v1201 = vld [vmem:[%s1198 + $0x10] sm:$0xff]
  %v1202 = vld [vmem:[%s1198 + $0x18] sm:$0xff]
  %v1203 = vld [vmem:[%s1198 + $0x20] sm:$0xff]
  %v1204 = vld [vmem:[%s1198 + $0x28] sm:$0xff]
  %v1205 = vld [vmem:[%s1198 + $0x30] sm:$0xff]
  %v1206 = vld [vmem:[%s1198 + $0x38] sm:$0xff]
  %v1207 = vld [vmem:[%s1198 + $0x40] sm:$0xff]
  %v1208 = vld [vmem:[%s1198 + $0x48] sm:$0xff]
  %v1209 = vld [vmem:[%s1198 + $0x50] sm:$0xff]
  %v1210 = vld [vmem:[%s1198 + $0x58] sm:$0xff]
  %v1211 = vld [vmem:[%s1198 + $0x60] sm:$0xff]
  %v1212 = vld [vmem:[%s1198 + $0x68] sm:$0xff]
  %v1213 = vld [vmem:[%s1198 + $0x70] sm:$0xff]
  %v1214 = vld [vmem:[%s1198 + $0x78] sm:$0xff]
  %s1215 = scalar_lea.vmem %s4, 256
  %v1216 = vld [vmem:[%s1215] sm:$0xff]
  %v1217 = vld [vmem:[%s1215 + $0x8] sm:$0xff]
  %v1218 = vld [vmem:[%s1215 + $0x10] sm:$0xff]
  %v1219 = vld [vmem:[%s1215 + $0x18] sm:$0xff]
  %v1220 = vld [vmem:[%s1215 + $0x20] sm:$0xff]
  %v1221 = vld [vmem:[%s1215 + $0x28] sm:$0xff]
  %v1222 = vld [vmem:[%s1215 + $0x30] sm:$0xff]
  %v1223 = vld [vmem:[%s1215 + $0x38] sm:$0xff]
  %v1224 = vld [vmem:[%s1215 + $0x40] sm:$0xff]
  %v1225 = vld [vmem:[%s1215 + $0x48] sm:$0xff]
  %v1226 = vld [vmem:[%s1215 + $0x50] sm:$0xff]
  %v1227 = vld [vmem:[%s1215 + $0x58] sm:$0xff]
  %v1228 = vld [vmem:[%s1215 + $0x60] sm:$0xff]
  %v1229 = vld [vmem:[%s1215 + $0x68] sm:$0xff]
  %v1230 = vld [vmem:[%s1215 + $0x70] sm:$0xff]
  %v1231 = vld [vmem:[%s1215 + $0x78] sm:$0xff]
  %s1232 = scalar_lea.vmem %s4, 384
  %v1233 = vld [vmem:[%s1232] sm:$0xff]
  %v1234 = vld [vmem:[%s1232 + $0x8] sm:$0xff]
  %v1235 = vld [vmem:[%s1232 + $0x10] sm:$0xff]
  %v1236 = vld [vmem:[%s1232 + $0x18] sm:$0xff]
  %v1237 = vld [vmem:[%s1232 + $0x20] sm:$0xff]
  %v1238 = vld [vmem:[%s1232 + $0x28] sm:$0xff]
  %v1239 = vld [vmem:[%s1232 + $0x30] sm:$0xff]
  %v1240 = vld [vmem:[%s1232 + $0x38] sm:$0xff]
  %v1241 = vld [vmem:[%s1232 + $0x40] sm:$0xff]
  %v1242 = vld [vmem:[%s1232 + $0x48] sm:$0xff]
  %v1243 = vld [vmem:[%s1232 + $0x50] sm:$0xff]
  %v1244 = vld [vmem:[%s1232 + $0x58] sm:$0xff]
  %v1245 = vld [vmem:[%s1232 + $0x60] sm:$0xff]
  %v1246 = vld [vmem:[%s1232 + $0x68] sm:$0xff]
  %v1247 = vld [vmem:[%s1232 + $0x70] sm:$0xff]
  %v1248 = vld [vmem:[%s1232 + $0x78] sm:$0xff]
  %1249 = vxpose.xlu0.b32.start [1/16] %v1166, 128
  %1250 = vxpose.xlu0.b32.cont [2/16] %v1167, 128
  %1251 = vxpose.xlu0.b32.cont [3/16] %v1168, 128
  %1252 = vxpose.xlu0.b32.cont [4/16] %v1169, 128
  %1253 = vxpose.xlu0.b32.cont [5/16] %v1170, 128
  %1254 = vxpose.xlu0.b32.cont [6/16] %v1171, 128
  %1255 = vxpose.xlu0.b32.cont [7/16] %v1172, 128
  %1256 = vxpose.xlu0.b32.cont [8/16] %v1173, 128
  %1257 = vxpose.xlu0.b32.cont [9/16] 0.0, 128
  %1258 = vxpose.xlu0.b32.cont [10/16] 0.0, 128
  %1259 = vxpose.xlu0.b32.cont [11/16] 0.0, 128
  %1260 = vxpose.xlu0.b32.cont [12/16] 0.0, 128
  %1261 = vxpose.xlu0.b32.cont [13/16] 0.0, 128
  %1262 = vxpose.xlu0.b32.cont [14/16] 0.0, 128
  %1263 = vxpose.xlu0.b32.cont [15/16] 0.0, 128
  %1264 = vxpose.xlu0.b32.end [16/16] 0.0, 128
  %v1265 = vpop.trf.xlu0
  %v1266 = vpop.trf.xlu0
  %v1267 = vpop.trf.xlu0
  %v1268 = vpop.trf.xlu0
  %v1269 = vpop.trf.xlu0
  %v1270 = vpop.trf.xlu0
  %v1271 = vpop.trf.xlu0
  %v1272 = vpop.trf.xlu0
  %v1273 = vpop.trf.xlu0
  %v1274 = vpop.trf.xlu0
  %v1275 = vpop.trf.xlu0
  %v1276 = vpop.trf.xlu0
  %v1277 = vpop.trf.xlu0
  %v1278 = vpop.trf.xlu0
  %v1279 = vpop.trf.xlu0
  %v1280 = vpop.trf.xlu0
  %v1282 = vrot.slane %v1265, 4
  %v1283 = vsel %vm115, %v1282, 0
  %1285 = vmatprep.subr.mxu0 %v1200
  %1286 = vmatpush1.msra.mxu0 %v1199
  %1287 = vmatprep.subr.mxu0 %v1202
  %1288 = vmatpush1.msra.mxu0 %v1201
  %1289 = vmatprep.subr.mxu0 %v1204
  %1290 = vmatpush1.msra.mxu0 %v1203
  %1291 = vmatprep.subr.mxu0 %v1206
  %1292 = vmatpush1.msra.mxu0 %v1205
  %1293 = vmatprep.subr.mxu0 %v1208
  %1294 = vmatpush1.msra.mxu0 %v1207
  %1295 = vmatprep.subr.mxu0 %v1210
  %1296 = vmatpush1.msra.mxu0 %v1209
  %1297 = vmatprep.subr.mxu0 %v1212
  %1298 = vmatpush1.msra.mxu0 %v1211
  %1299 = vmatprep.subr.mxu0 %v1214
  %1300 = vmatpush1.msra.mxu0 %v1213
  %1301 = vmatprep.subr.mxu0 0.0
  %1302 = vmatpush1.msra.mxu0 0.0
  %1303 = vmatprep.subr.mxu0 0.0
  %1304 = vmatpush1.msra.mxu0 0.0
  %1305 = vmatprep.subr.mxu0 0.0
  %1306 = vmatpush1.msra.mxu0 0.0
  %1307 = vmatprep.subr.mxu0 0.0
  %1308 = vmatpush1.msra.mxu0 0.0
  %1309 = vmatprep.subr.mxu0 0.0
  %1310 = vmatpush1.msra.mxu0 0.0
  %1311 = vmatprep.subr.mxu0 0.0
  %1312 = vmatpush1.msra.mxu0 0.0
  %1313 = vmatprep.subr.mxu0 0.0
  %1314 = vmatpush1.msra.mxu0 0.0
  %1315 = vmatprep.subr.mxu0 0.0
  %1316 = vmatpush1.msra.mxu0 0.0
  %1317 = vmatprep.subr.mxu0 0.0
  %1318 = vmatpush1.msra.mxu0 0.0
  %1319 = vmatprep.subr.mxu0 0.0
  %1320 = vmatpush1.msra.mxu0 0.0
  %1321 = vmatprep.subr.mxu0 0.0
  %1322 = vmatpush1.msra.mxu0 0.0
  %1323 = vmatprep.subr.mxu0 0.0
  %1324 = vmatpush1.msra.mxu0 0.0
  %1325 = vmatprep.subr.mxu0 0.0
  %1326 = vmatpush1.msra.mxu0 0.0
  %1327 = vmatprep.subr.mxu0 0.0
  %1328 = vmatpush1.msra.mxu0 0.0
  %1329 = vmatprep.subr.mxu0 0.0
  %1330 = vmatpush1.msra.mxu0 0.0
  %1331 = vmatprep.subr.mxu0 0.0
  %1332 = vmatpush1.msra.mxu0 0.0
  %1333 = vmatprep.subr.mxu0 0.0
  %1334 = vmatpush1.msra.mxu0 0.0
  %1335 = vmatprep.subr.mxu0 0.0
  %1336 = vmatpush1.msra.mxu0 0.0
  %1337 = vmatprep.subr.mxu0 0.0
  %1338 = vmatpush1.msra.mxu0 0.0
  %1339 = vmatprep.subr.mxu0 0.0
  %1340 = vmatpush1.msra.mxu0 0.0
  %1341 = vmatprep.subr.mxu0 0.0
  %1342 = vmatpush1.msra.mxu0 0.0
  %1343 = vmatprep.subr.mxu0 0.0
  %1344 = vmatpush1.msra.mxu0 0.0
  %1345 = vmatprep.subr.mxu0 0.0
  %1346 = vmatpush1.msra.mxu0 0.0
  %1347 = vmatprep.subr.mxu0 0.0
  %1348 = vmatpush1.msra.mxu0 0.0
  %1349 = vmatprep.mubr.f32.mxu0 0.0
  %1350 = vmatmul.mubr.f32.gmra.mrb[0].mxu0 %v1283
  %v1351 = vpop.f32.mrb[0].mxu0
  %v1352 = vadd.f32 0.0, %v1351
  %v1353 = vpop.f32.mrb[0].mxu0
  %v1354 = vadd.f32 0.0, %v1353
  %1355 = vdwg.mxu0
  %v1356 = vsel %vm115, %v1265, 0
  %1358 = vmatprep.subr.mxu0 %v1183
  %1359 = vmatpush1.msra.mxu0 %v1182
  %1360 = vmatprep.subr.mxu0 %v1185
  %1361 = vmatpush1.msra.mxu0 %v1184
  %1362 = vmatprep.subr.mxu0 %v1187
  %1363 = vmatpush1.msra.mxu0 %v1186
  %1364 = vmatprep.subr.mxu0 %v1189
  %1365 = vmatpush1.msra.mxu0 %v1188
  %1366 = vmatprep.subr.mxu0 %v1191
  %1367 = vmatpush1.msra.mxu0 %v1190
  %1368 = vmatprep.subr.mxu0 %v1193
  %1369 = vmatpush1.msra.mxu0 %v1192
  %1370 = vmatprep.subr.mxu0 %v1195
  %1371 = vmatpush1.msra.mxu0 %v1194
  %1372 = vmatprep.subr.mxu0 %v1197
  %1373 = vmatpush1.msra.mxu0 %v1196
  %1374 = vmatprep.subr.mxu0 0.0
  %1375 = vmatpush1.msra.mxu0 0.0
  %1376 = vmatprep.subr.mxu0 0.0
  %1377 = vmatpush1.msra.mxu0 0.0
  %1378 = vmatprep.subr.mxu0 0.0
  %1379 = vmatpush1.msra.mxu0 0.0
  %1380 = vmatprep.subr.mxu0 0.0
  %1381 = vmatpush1.msra.mxu0 0.0
  %1382 = vmatprep.subr.mxu0 0.0
  %1383 = vmatpush1.msra.mxu0 0.0
  %1384 = vmatprep.subr.mxu0 0.0
  %1385 = vmatpush1.msra.mxu0 0.0
  %1386 = vmatprep.subr.mxu0 0.0
  %1387 = vmatpush1.msra.mxu0 0.0
  %1388 = vmatprep.subr.mxu0 0.0
  %1389 = vmatpush1.msra.mxu0 0.0
  %1390 = vmatprep.subr.mxu0 0.0
  %1391 = vmatpush1.msra.mxu0 0.0
  %1392 = vmatprep.subr.mxu0 0.0
  %1393 = vmatpush1.msra.mxu0 0.0
  %1394 = vmatprep.subr.mxu0 0.0
  %1395 = vmatpush1.msra.mxu0 0.0
  %1396 = vmatprep.subr.mxu0 0.0
  %1397 = vmatpush1.msra.mxu0 0.0
  %1398 = vmatprep.subr.mxu0 0.0
  %1399 = vmatpush1.msra.mxu0 0.0
  %1400 = vmatprep.subr.mxu0 0.0
  %1401 = vmatpush1.msra.mxu0 0.0
  %1402 = vmatprep.subr.mxu0 0.0
  %1403 = vmatpush1.msra.mxu0 0.0
  %1404 = vmatprep.subr.mxu0 0.0
  %1405 = vmatpush1.msra.mxu0 0.0
  %1406 = vmatprep.subr.mxu0 0.0
  %1407 = vmatpush1.msra.mxu0 0.0
  %1408 = vmatprep.subr.mxu0 0.0
  %1409 = vmatpush1.msra.mxu0 0.0
  %1410 = vmatprep.subr.mxu0 0.0
  %1411 = vmatpush1.msra.mxu0 0.0
  %1412 = vmatprep.subr.mxu0 0.0
  %1413 = vmatpush1.msra.mxu0 0.0
  %1414 = vmatprep.subr.mxu0 0.0
  %1415 = vmatpush1.msra.mxu0 0.0
  %1416 = vmatprep.subr.mxu0 0.0
  %1417 = vmatpush1.msra.mxu0 0.0
  %1418 = vmatprep.subr.mxu0 0.0
  %1419 = vmatpush1.msra.mxu0 0.0
  %1420 = vmatprep.subr.mxu0 0.0
  %1421 = vmatpush1.msra.mxu0 0.0
  %1422 = vmatprep.mubr.f32.mxu0 0.0
  %1423 = vmatmul.mubr.f32.gmra.mrb[0].mxu0 %v1356
  %v1424 = vpop.f32.mrb[0].mxu0
  %v1425 = vadd.f32 %v1352, %v1424
  %v1426 = vpop.f32.mrb[0].mxu0
  %v1427 = vadd.f32 %v1354, %v1426
  %1428 = vdwg.mxu0
  %v1430 = vsel %vm115, %v1266, 0
  %1432 = vmatprep.subr.mxu0 %v1217
  %1433 = vmatpush1.msra.mxu0 %v1216
  %1434 = vmatprep.subr.mxu0 %v1219
  %1435 = vmatpush1.msra.mxu0 %v1218
  %1436 = vmatprep.subr.mxu0 %v1221
  %1437 = vmatpush1.msra.mxu0 %v1220
  %1438 = vmatprep.subr.mxu0 %v1223
  %1439 = vmatpush1.msra.mxu0 %v1222
  %1440 = vmatprep.subr.mxu0 %v1225
  %1441 = vmatpush1.msra.mxu0 %v1224
  %1442 = vmatprep.subr.mxu0 %v1227
  %1443 = vmatpush1.msra.mxu0 %v1226
  %1444 = vmatprep.subr.mxu0 %v1229
  %1445 = vmatpush1.msra.mxu0 %v1228
  %1446 = vmatprep.subr.mxu0 %v1231
  %1447 = vmatpush1.msra.mxu0 %v1230
  %1448 = vmatprep.subr.mxu0 0.0
  %1449 = vmatpush1.msra.mxu0 0.0
  %1450 = vmatprep.subr.mxu0 0.0
  %1451 = vmatpush1.msra.mxu0 0.0
  %1452 = vmatprep.subr.mxu0 0.0
  %1453 = vmatpush1.msra.mxu0 0.0
  %1454 = vmatprep.subr.mxu0 0.0
  %1455 = vmatpush1.msra.mxu0 0.0
  %1456 = vmatprep.subr.mxu0 0.0
  %1457 = vmatpush1.msra.mxu0 0.0
  %1458 = vmatprep.subr.mxu0 0.0
  %1459 = vmatpush1.msra.mxu0 0.0
  %1460 = vmatprep.subr.mxu0 0.0
  %1461 = vmatpush1.msra.mxu0 0.0
  %1462 = vmatprep.subr.mxu0 0.0
  %1463 = vmatpush1.msra.mxu0 0.0
  %1464 = vmatprep.subr.mxu0 0.0
  %1465 = vmatpush1.msra.mxu0 0.0
  %1466 = vmatprep.subr.mxu0 0.0
  %1467 = vmatpush1.msra.mxu0 0.0
  %1468 = vmatprep.subr.mxu0 0.0
  %1469 = vmatpush1.msra.mxu0 0.0
  %1470 = vmatprep.subr.mxu0 0.0
  %1471 = vmatpush1.msra.mxu0 0.0
  %1472 = vmatprep.subr.mxu0 0.0
  %1473 = vmatpush1.msra.mxu0 0.0
  %1474 = vmatprep.subr.mxu0 0.0
  %1475 = vmatpush1.msra.mxu0 0.0
  %1476 = vmatprep.subr.mxu0 0.0
  %1477 = vmatpush1.msra.mxu0 0.0
  %1478 = vmatprep.subr.mxu0 0.0
  %1479 = vmatpush1.msra.mxu0 0.0
  %1480 = vmatprep.subr.mxu0 0.0
  %1481 = vmatpush1.msra.mxu0 0.0
  %1482 = vmatprep.subr.mxu0 0.0
  %1483 = vmatpush1.msra.mxu0 0.0
  %1484 = vmatprep.subr.mxu0 0.0
  %1485 = vmatpush1.msra.mxu0 0.0
  %1486 = vmatprep.subr.mxu0 0.0
  %1487 = vmatpush1.msra.mxu0 0.0
  %1488 = vmatprep.subr.mxu0 0.0
  %1489 = vmatpush1.msra.mxu0 0.0
  %1490 = vmatprep.subr.mxu0 0.0
  %1491 = vmatpush1.msra.mxu0 0.0
  %1492 = vmatprep.subr.mxu0 0.0
  %1493 = vmatpush1.msra.mxu0 0.0
  %1494 = vmatprep.subr.mxu0 0.0
  %1495 = vmatpush1.msra.mxu0 0.0
  %1496 = vmatprep.mubr.f32.mxu0 0.0
  %1497 = vmatmul.mubr.f32.gmra.mrb[0].mxu0 %v1430
  %v1498 = vpop.f32.mrb[0].mxu0
  %v1499 = vadd.f32 0.0, %v1498
  %v1500 = vpop.f32.mrb[0].mxu0
  %v1501 = vadd.f32 0.0, %v1500
  %1502 = vdwg.mxu0
  %v1503 = vadd.f32 %v1425, %v1499
  %v1504 = vadd.f32 %v1427, %v1501
  %v1505 = vrot.slane %v1266, 4
  %v1506 = vsel %vm115, %v1505, 0
  %1508 = vmatprep.subr.mxu0 %v1234
  %1509 = vmatpush1.msra.mxu0 %v1233
  %1510 = vmatprep.subr.mxu0 %v1236
  %1511 = vmatpush1.msra.mxu0 %v1235
  %1512 = vmatprep.subr.mxu0 %v1238
  %1513 = vmatpush1.msra.mxu0 %v1237
  %1514 = vmatprep.subr.mxu0 %v1240
  %1515 = vmatpush1.msra.mxu0 %v1239
  %1516 = vmatprep.subr.mxu0 %v1242
  %1517 = vmatpush1.msra.mxu0 %v1241
  %1518 = vmatprep.subr.mxu0 %v1244
  %1519 = vmatpush1.msra.mxu0 %v1243
  %1520 = vmatprep.subr.mxu0 %v1246
  %1521 = vmatpush1.msra.mxu0 %v1245
  %1522 = vmatprep.subr.mxu0 %v1248
  %1523 = vmatpush1.msra.mxu0 %v1247
  %1524 = vmatprep.subr.mxu0 0.0
  %1525 = vmatpush1.msra.mxu0 0.0
  %1526 = vmatprep.subr.mxu0 0.0
  %1527 = vmatpush1.msra.mxu0 0.0
  %1528 = vmatprep.subr.mxu0 0.0
  %1529 = vmatpush1.msra.mxu0 0.0
  %1530 = vmatprep.subr.mxu0 0.0
  %1531 = vmatpush1.msra.mxu0 0.0
  %1532 = vmatprep.subr.mxu0 0.0
  %1533 = vmatpush1.msra.mxu0 0.0
  %1534 = vmatprep.subr.mxu0 0.0
  %1535 = vmatpush1.msra.mxu0 0.0
  %1536 = vmatprep.subr.mxu0 0.0
  %1537 = vmatpush1.msra.mxu0 0.0
  %1538 = vmatprep.subr.mxu0 0.0
  %1539 = vmatpush1.msra.mxu0 0.0
  %1540 = vmatprep.subr.mxu0 0.0
  %1541 = vmatpush1.msra.mxu0 0.0
  %1542 = vmatprep.subr.mxu0 0.0
  %1543 = vmatpush1.msra.mxu0 0.0
  %1544 = vmatprep.subr.mxu0 0.0
  %1545 = vmatpush1.msra.mxu0 0.0
  %1546 = vmatprep.subr.mxu0 0.0
  %1547 = vmatpush1.msra.mxu0 0.0
  %1548 = vmatprep.subr.mxu0 0.0
  %1549 = vmatpush1.msra.mxu0 0.0
  %1550 = vmatprep.subr.mxu0 0.0
  %1551 = vmatpush1.msra.mxu0 0.0
  %1552 = vmatprep.subr.mxu0 0.0
  %1553 = vmatpush1.msra.mxu0 0.0
  %1554 = vmatprep.subr.mxu0 0.0
  %1555 = vmatpush1.msra.mxu0 0.0
  %1556 = vmatprep.subr.mxu0 0.0
  %1557 = vmatpush1.msra.mxu0 0.0
  %1558 = vmatprep.subr.mxu0 0.0
  %1559 = vmatpush1.msra.mxu0 0.0
  %1560 = vmatprep.subr.mxu0 0.0
  %1561 = vmatpush1.msra.mxu0 0.0
  %1562 = vmatprep.subr.mxu0 0.0
  %1563 = vmatpush1.msra.mxu0 0.0
  %1564 = vmatprep.subr.mxu0 0.0
  %1565 = vmatpush1.msra.mxu0 0.0
  %1566 = vmatprep.subr.mxu0 0.0
  %1567 = vmatpush1.msra.mxu0 0.0
  %1568 = vmatprep.subr.mxu0 0.0
  %1569 = vmatpush1.msra.mxu0 0.0
  %1570 = vmatprep.subr.mxu0 0.0
  %1571 = vmatpush1.msra.mxu0 0.0
  %1572 = vmatprep.mubr.f32.mxu0 0.0
  %1573 = vmatmul.mubr.f32.gmra.mrb[0].mxu0 %v1506
  %v1574 = vpop.f32.mrb[0].mxu0
  %v1575 = vadd.f32 0.0, %v1574
  %v1576 = vpop.f32.mrb[0].mxu0
  %v1577 = vadd.f32 0.0, %v1576
  %1578 = vdwg.mxu0
  %v1579 = vadd.f32 %v1503, %v1575
  %v1580 = vadd.f32 %v1504, %v1577
  %1581 = vxpose.xlu0.b32.start [1/16] %v1174, 128
  %1582 = vxpose.xlu0.b32.cont [2/16] %v1175, 128
  %1583 = vxpose.xlu0.b32.cont [3/16] %v1176, 128
  %1584 = vxpose.xlu0.b32.cont [4/16] %v1177, 128
  %1585 = vxpose.xlu0.b32.cont [5/16] %v1178, 128
  %1586 = vxpose.xlu0.b32.cont [6/16] %v1179, 128
  %1587 = vxpose.xlu0.b32.cont [7/16] %v1180, 128
  %1588 = vxpose.xlu0.b32.cont [8/16] %v1181, 128
  %1589 = vxpose.xlu0.b32.cont [9/16] 0.0, 128
  %1590 = vxpose.xlu0.b32.cont [10/16] 0.0, 128
  %1591 = vxpose.xlu0.b32.cont [11/16] 0.0, 128
  %1592 = vxpose.xlu0.b32.cont [12/16] 0.0, 128
  %1593 = vxpose.xlu0.b32.cont [13/16] 0.0, 128
  %1594 = vxpose.xlu0.b32.cont [14/16] 0.0, 128
  %1595 = vxpose.xlu0.b32.cont [15/16] 0.0, 128
  %1596 = vxpose.xlu0.b32.end [16/16] 0.0, 128
  %v1597 = vpop.trf.xlu0
  %v1598 = vpop.trf.xlu0
  %v1599 = vpop.trf.xlu0
  %v1600 = vpop.trf.xlu0
  %v1601 = vpop.trf.xlu0
  %v1602 = vpop.trf.xlu0
  %v1603 = vpop.trf.xlu0
  %v1604 = vpop.trf.xlu0
  %v1605 = vpop.trf.xlu0
  %v1606 = vpop.trf.xlu0
  %v1607 = vpop.trf.xlu0
  %v1608 = vpop.trf.xlu0
  %v1609 = vpop.trf.xlu0
  %v1610 = vpop.trf.xlu0
  %v1611 = vpop.trf.xlu0
  %v1612 = vpop.trf.xlu0
  %v1614 = vrot.slane %v1597, 4
  %v1615 = vsel %vm115, %v1614, 0
  %1617 = vmatprep.subr.mxu0 %v1200
  %1618 = vmatpush1.msra.mxu0 %v1199
  %1619 = vmatprep.subr.mxu0 %v1202
  %1620 = vmatpush1.msra.mxu0 %v1201
  %1621 = vmatprep.subr.mxu0 %v1204
  %1622 = vmatpush1.msra.mxu0 %v1203
  %1623 = vmatprep.subr.mxu0 %v1206
  %1624 = vmatpush1.msra.mxu0 %v1205
  %1625 = vmatprep.subr.mxu0 %v1208
  %1626 = vmatpush1.msra.mxu0 %v1207
  %1627 = vmatprep.subr.mxu0 %v1210
  %1628 = vmatpush1.msra.mxu0 %v1209
  %1629 = vmatprep.subr.mxu0 %v1212
  %1630 = vmatpush1.msra.mxu0 %v1211
  %1631 = vmatprep.subr.mxu0 %v1214
  %1632 = vmatpush1.msra.mxu0 %v1213
  %1633 = vmatprep.subr.mxu0 0.0
  %1634 = vmatpush1.msra.mxu0 0.0
  %1635 = vmatprep.subr.mxu0 0.0
  %1636 = vmatpush1.msra.mxu0 0.0
  %1637 = vmatprep.subr.mxu0 0.0
  %1638 = vmatpush1.msra.mxu0 0.0
  %1639 = vmatprep.subr.mxu0 0.0
  %1640 = vmatpush1.msra.mxu0 0.0
  %1641 = vmatprep.subr.mxu0 0.0
  %1642 = vmatpush1.msra.mxu0 0.0
  %1643 = vmatprep.subr.mxu0 0.0
  %1644 = vmatpush1.msra.mxu0 0.0
  %1645 = vmatprep.subr.mxu0 0.0
  %1646 = vmatpush1.msra.mxu0 0.0
  %1647 = vmatprep.subr.mxu0 0.0
  %1648 = vmatpush1.msra.mxu0 0.0
  %1649 = vmatprep.subr.mxu0 0.0
  %1650 = vmatpush1.msra.mxu0 0.0
  %1651 = vmatprep.subr.mxu0 0.0
  %1652 = vmatpush1.msra.mxu0 0.0
  %1653 = vmatprep.subr.mxu0 0.0
  %1654 = vmatpush1.msra.mxu0 0.0
  %1655 = vmatprep.subr.mxu0 0.0
  %1656 = vmatpush1.msra.mxu0 0.0
  %1657 = vmatprep.subr.mxu0 0.0
  %1658 = vmatpush1.msra.mxu0 0.0
  %1659 = vmatprep.subr.mxu0 0.0
  %1660 = vmatpush1.msra.mxu0 0.0
  %1661 = vmatprep.subr.mxu0 0.0
  %1662 = vmatpush1.msra.mxu0 0.0
  %1663 = vmatprep.subr.mxu0 0.0
  %1664 = vmatpush1.msra.mxu0 0.0
  %1665 = vmatprep.subr.mxu0 0.0
  %1666 = vmatpush1.msra.mxu0 0.0
  %1667 = vmatprep.subr.mxu0 0.0
  %1668 = vmatpush1.msra.mxu0 0.0
  %1669 = vmatprep.subr.mxu0 0.0
  %1670 = vmatpush1.msra.mxu0 0.0
  %1671 = vmatprep.subr.mxu0 0.0
  %1672 = vmatpush1.msra.mxu0 0.0
  %1673 = vmatprep.subr.mxu0 0.0
  %1674 = vmatpush1.msra.mxu0 0.0
  %1675 = vmatprep.subr.mxu0 0.0
  %1676 = vmatpush1.msra.mxu0 0.0
  %1677 = vmatprep.subr.mxu0 0.0
  %1678 = vmatpush1.msra.mxu0 0.0
  %1679 = vmatprep.subr.mxu0 0.0
  %1680 = vmatpush1.msra.mxu0 0.0
  %1681 = vmatprep.mubr.f32.mxu0 0.0
  %1682 = vmatmul.mubr.f32.gmra.mrb[0].mxu0 %v1615
  %v1683 = vpop.f32.mrb[0].mxu0
  %v1684 = vadd.f32 0.0, %v1683
  %v1685 = vpop.f32.mrb[0].mxu0
  %v1686 = vadd.f32 0.0, %v1685
  %1687 = vdwg.mxu0
  %v1688 = vsel %vm115, %v1597, 0
  %1690 = vmatprep.subr.mxu0 %v1183
  %1691 = vmatpush1.msra.mxu0 %v1182
  %1692 = vmatprep.subr.mxu0 %v1185
  %1693 = vmatpush1.msra.mxu0 %v1184
  %1694 = vmatprep.subr.mxu0 %v1187
  %1695 = vmatpush1.msra.mxu0 %v1186
  %1696 = vmatprep.subr.mxu0 %v1189
  %1697 = vmatpush1.msra.mxu0 %v1188
  %1698 = vmatprep.subr.mxu0 %v1191
  %1699 = vmatpush1.msra.mxu0 %v1190
  %1700 = vmatprep.subr.mxu0 %v1193
  %1701 = vmatpush1.msra.mxu0 %v1192
  %1702 = vmatprep.subr.mxu0 %v1195
  %1703 = vmatpush1.msra.mxu0 %v1194
  %1704 = vmatprep.subr.mxu0 %v1197
  %1705 = vmatpush1.msra.mxu0 %v1196
  %1706 = vmatprep.subr.mxu0 0.0
  %1707 = vmatpush1.msra.mxu0 0.0
  %1708 = vmatprep.subr.mxu0 0.0
  %1709 = vmatpush1.msra.mxu0 0.0
  %1710 = vmatprep.subr.mxu0 0.0
  %1711 = vmatpush1.msra.mxu0 0.0
  %1712 = vmatprep.subr.mxu0 0.0
  %1713 = vmatpush1.msra.mxu0 0.0
  %1714 = vmatprep.subr.mxu0 0.0
  %1715 = vmatpush1.msra.mxu0 0.0
  %1716 = vmatprep.subr.mxu0 0.0
  %1717 = vmatpush1.msra.mxu0 0.0
  %1718 = vmatprep.subr.mxu0 0.0
  %1719 = vmatpush1.msra.mxu0 0.0
  %1720 = vmatprep.subr.mxu0 0.0
  %1721 = vmatpush1.msra.mxu0 0.0
  %1722 = vmatprep.subr.mxu0 0.0
  %1723 = vmatpush1.msra.mxu0 0.0
  %1724 = vmatprep.subr.mxu0 0.0
  %1725 = vmatpush1.msra.mxu0 0.0
  %1726 = vmatprep.subr.mxu0 0.0
  %1727 = vmatpush1.msra.mxu0 0.0
  %1728 = vmatprep.subr.mxu0 0.0
  %1729 = vmatpush1.msra.mxu0 0.0
  %1730 = vmatprep.subr.mxu0 0.0
  %1731 = vmatpush1.msra.mxu0 0.0
  %1732 = vmatprep.subr.mxu0 0.0
  %1733 = vmatpush1.msra.mxu0 0.0
  %1734 = vmatprep.subr.mxu0 0.0
  %1735 = vmatpush1.msra.mxu0 0.0
  %1736 = vmatprep.subr.mxu0 0.0
  %1737 = vmatpush1.msra.mxu0 0.0
  %1738 = vmatprep.subr.mxu0 0.0
  %1739 = vmatpush1.msra.mxu0 0.0
  %1740 = vmatprep.subr.mxu0 0.0
  %1741 = vmatpush1.msra.mxu0 0.0
  %1742 = vmatprep.subr.mxu0 0.0
  %1743 = vmatpush1.msra.mxu0 0.0
  %1744 = vmatprep.subr.mxu0 0.0
  %1745 = vmatpush1.msra.mxu0 0.0
  %1746 = vmatprep.subr.mxu0 0.0
  %1747 = vmatpush1.msra.mxu0 0.0
  %1748 = vmatprep.subr.mxu0 0.0
  %1749 = vmatpush1.msra.mxu0 0.0
  %1750 = vmatprep.subr.mxu0 0.0
  %1751 = vmatpush1.msra.mxu0 0.0
  %1752 = vmatprep.subr.mxu0 0.0
  %1753 = vmatpush1.msra.mxu0 0.0
  %1754 = vmatprep.mubr.f32.mxu0 0.0
  %1755 = vmatmul.mubr.f32.gmra.mrb[0].mxu0 %v1688
  %v1756 = vpop.f32.mrb[0].mxu0
  %v1757 = vadd.f32 %v1684, %v1756
  %v1758 = vpop.f32.mrb[0].mxu0
  %v1759 = vadd.f32 %v1686, %v1758
  %1760 = vdwg.mxu0
  %v1762 = vsel %vm115, %v1598, 0
  %1764 = vmatprep.subr.mxu0 %v1217
  %1765 = vmatpush1.msra.mxu0 %v1216
  %1766 = vmatprep.subr.mxu0 %v1219
  %1767 = vmatpush1.msra.mxu0 %v1218
  %1768 = vmatprep.subr.mxu0 %v1221
  %1769 = vmatpush1.msra.mxu0 %v1220
  %1770 = vmatprep.subr.mxu0 %v1223
  %1771 = vmatpush1.msra.mxu0 %v1222
  %1772 = vmatprep.subr.mxu0 %v1225
  %1773 = vmatpush1.msra.mxu0 %v1224
  %1774 = vmatprep.subr.mxu0 %v1227
  %1775 = vmatpush1.msra.mxu0 %v1226
  %1776 = vmatprep.subr.mxu0 %v1229
  %1777 = vmatpush1.msra.mxu0 %v1228
  %1778 = vmatprep.subr.mxu0 %v1231
  %1779 = vmatpush1.msra.mxu0 %v1230
  %1780 = vmatprep.subr.mxu0 0.0
  %1781 = vmatpush1.msra.mxu0 0.0
  %1782 = vmatprep.subr.mxu0 0.0
  %1783 = vmatpush1.msra.mxu0 0.0
  %1784 = vmatprep.subr.mxu0 0.0
  %1785 = vmatpush1.msra.mxu0 0.0
  %1786 = vmatprep.subr.mxu0 0.0
  %1787 = vmatpush1.msra.mxu0 0.0
  %1788 = vmatprep.subr.mxu0 0.0
  %1789 = vmatpush1.msra.mxu0 0.0
  %1790 = vmatprep.subr.mxu0 0.0
  %1791 = vmatpush1.msra.mxu0 0.0
  %1792 = vmatprep.subr.mxu0 0.0
  %1793 = vmatpush1.msra.mxu0 0.0
  %1794 = vmatprep.subr.mxu0 0.0
  %1795 = vmatpush1.msra.mxu0 0.0
  %1796 = vmatprep.subr.mxu0 0.0
  %1797 = vmatpush1.msra.mxu0 0.0
  %1798 = vmatprep.subr.mxu0 0.0
  %1799 = vmatpush1.msra.mxu0 0.0
  %1800 = vmatprep.subr.mxu0 0.0
  %1801 = vmatpush1.msra.mxu0 0.0
  %1802 = vmatprep.subr.mxu0 0.0
  %1803 = vmatpush1.msra.mxu0 0.0
  %1804 = vmatprep.subr.mxu0 0.0
  %1805 = vmatpush1.msra.mxu0 0.0
  %1806 = vmatprep.subr.mxu0 0.0
  %1807 = vmatpush1.msra.mxu0 0.0
  %1808 = vmatprep.subr.mxu0 0.0
  %1809 = vmatpush1.msra.mxu0 0.0
  %1810 = vmatprep.subr.mxu0 0.0
  %1811 = vmatpush1.msra.mxu0 0.0
  %1812 = vmatprep.subr.mxu0 0.0
  %1813 = vmatpush1.msra.mxu0 0.0
  %1814 = vmatprep.subr.mxu0 0.0
  %1815 = vmatpush1.msra.mxu0 0.0
  %1816 = vmatprep.subr.mxu0 0.0
  %1817 = vmatpush1.msra.mxu0 0.0
  %1818 = vmatprep.subr.mxu0 0.0
  %1819 = vmatpush1.msra.mxu0 0.0
  %1820 = vmatprep.subr.mxu0 0.0
  %1821 = vmatpush1.msra.mxu0 0.0
  %1822 = vmatprep.subr.mxu0 0.0
  %1823 = vmatpush1.msra.mxu0 0.0
  %1824 = vmatprep.subr.mxu0 0.0
  %1825 = vmatpush1.msra.mxu0 0.0
  %1826 = vmatprep.subr.mxu0 0.0
  %1827 = vmatpush1.msra.mxu0 0.0
  %1828 = vmatprep.mubr.f32.mxu0 0.0
  %1829 = vmatmul.mubr.f32.gmra.mrb[0].mxu0 %v1762
  %v1830 = vpop.f32.mrb[0].mxu0
  %v1831 = vadd.f32 0.0, %v1830
  %v1832 = vpop.f32.mrb[0].mxu0
  %v1833 = vadd.f32 0.0, %v1832
  %1834 = vdwg.mxu0
  %v1835 = vadd.f32 %v1757, %v1831
  %v1836 = vadd.f32 %v1759, %v1833
  %v1837 = vrot.slane %v1598, 4
  %v1838 = vsel %vm115, %v1837, 0
  %1840 = vmatprep.subr.mxu0 %v1234
  %1841 = vmatpush1.msra.mxu0 %v1233
  %1842 = vmatprep.subr.mxu0 %v1236
  %1843 = vmatpush1.msra.mxu0 %v1235
  %1844 = vmatprep.subr.mxu0 %v1238
  %1845 = vmatpush1.msra.mxu0 %v1237
  %1846 = vmatprep.subr.mxu0 %v1240
  %1847 = vmatpush1.msra.mxu0 %v1239
  %1848 = vmatprep.subr.mxu0 %v1242
  %1849 = vmatpush1.msra.mxu0 %v1241
  %1850 = vmatprep.subr.mxu0 %v1244
  %1851 = vmatpush1.msra.mxu0 %v1243
  %1852 = vmatprep.subr.mxu0 %v1246
  %1853 = vmatpush1.msra.mxu0 %v1245
  %1854 = vmatprep.subr.mxu0 %v1248
  %1855 = vmatpush1.msra.mxu0 %v1247
  %1856 = vmatprep.subr.mxu0 0.0
  %1857 = vmatpush1.msra.mxu0 0.0
  %1858 = vmatprep.subr.mxu0 0.0
  %1859 = vmatpush1.msra.mxu0 0.0
  %1860 = vmatprep.subr.mxu0 0.0
  %1861 = vmatpush1.msra.mxu0 0.0
  %1862 = vmatprep.subr.mxu0 0.0
  %1863 = vmatpush1.msra.mxu0 0.0
  %1864 = vmatprep.subr.mxu0 0.0
  %1865 = vmatpush1.msra.mxu0 0.0
  %1866 = vmatprep.subr.mxu0 0.0
  %1867 = vmatpush1.msra.mxu0 0.0
  %1868 = vmatprep.subr.mxu0 0.0
  %1869 = vmatpush1.msra.mxu0 0.0
  %1870 = vmatprep.subr.mxu0 0.0
  %1871 = vmatpush1.msra.mxu0 0.0
  %1872 = vmatprep.subr.mxu0 0.0
  %1873 = vmatpush1.msra.mxu0 0.0
  %1874 = vmatprep.subr.mxu0 0.0
  %1875 = vmatpush1.msra.mxu0 0.0
  %1876 = vmatprep.subr.mxu0 0.0
  %1877 = vmatpush1.msra.mxu0 0.0
  %1878 = vmatprep.subr.mxu0 0.0
  %1879 = vmatpush1.msra.mxu0 0.0
  %1880 = vmatprep.subr.mxu0 0.0
  %1881 = vmatpush1.msra.mxu0 0.0
  %1882 = vmatprep.subr.mxu0 0.0
  %1883 = vmatpush1.msra.mxu0 0.0
  %1884 = vmatprep.subr.mxu0 0.0
  %1885 = vmatpush1.msra.mxu0 0.0
  %1886 = vmatprep.subr.mxu0 0.0
  %1887 = vmatpush1.msra.mxu0 0.0
  %1888 = vmatprep.subr.mxu0 0.0
  %1889 = vmatpush1.msra.mxu0 0.0
  %1890 = vmatprep.subr.mxu0 0.0
  %1891 = vmatpush1.msra.mxu0 0.0
  %1892 = vmatprep.subr.mxu0 0.0
  %1893 = vmatpush1.msra.mxu0 0.0
  %1894 = vmatprep.subr.mxu0 0.0
  %1895 = vmatpush1.msra.mxu0 0.0
  %1896 = vmatprep.subr.mxu0 0.0
  %1897 = vmatpush1.msra.mxu0 0.0
  %1898 = vmatprep.subr.mxu0 0.0
  %1899 = vmatpush1.msra.mxu0 0.0
  %1900 = vmatprep.subr.mxu0 0.0
  %1901 = vmatpush1.msra.mxu0 0.0
  %1902 = vmatprep.subr.mxu0 0.0
  %1903 = vmatpush1.msra.mxu0 0.0
  %1904 = vmatprep.mubr.f32.mxu0 0.0
  %1905 = vmatmul.mubr.f32.gmra.mrb[0].mxu0 %v1838
  %v1906 = vpop.f32.mrb[0].mxu0
  %v1907 = vadd.f32 0.0, %v1906
  %v1908 = vpop.f32.mrb[0].mxu0
  %v1909 = vadd.f32 0.0, %v1908
  %1910 = vdwg.mxu0
  %v1911 = vadd.f32 %v1835, %v1907
  %v1912 = vadd.f32 %v1836, %v1909
  %v1913 = vsel %vm629, %v1579, 0.0
  %v1914 = vsel %vm629, %v1580, 0.0
  %v1915 = vadd.f32 %v1913, %v1914
  %1916 = vadd.xlane.f32.xlu0 %v1915
  %v1917 = vpop.xlane.xlu0 %1916
  %v1918 = vadd.f32 %v1917, 0.0
  %v1919 = vsel %vm629, %v1911, 0.0
  %v1920 = vsel %vm629, %v1912, 0.0
  %v1921 = vadd.f32 %v1919, %v1920
  %1922 = vadd.xlane.f32.xlu0 %v1921
  %v1923 = vpop.xlane.xlu0 %1922
  %v1924 = vadd.f32 %v1918, %v1923
  %v1925 = vmul.f32 %v1924, 0.001953125
  %v1926 = vsub.f32 %v1579, %v1925
  %v1927 = vsub.f32 %v1580, %v1925
  %v1928 = vmul.f32 %v1926, %v1926
  %v1929 = vmul.f32 %v1927, %v1927
  %v1930 = vsel %vm629, %v1928, 0.0
  %v1931 = vsel %vm629, %v1929, 0.0
  %v1932 = vadd.f32 %v1930, %v1931
  %1933 = vadd.xlane.f32.xlu0 %v1932
  %v1934 = vpop.xlane.xlu0 %1933
  %v1935 = vadd.f32 %v1934, 0.0
  %v1936 = vsub.f32 %v1911, %v1925
  %v1937 = vsub.f32 %v1912, %v1925
  %v1938 = vmul.f32 %v1936, %v1936
  %v1939 = vmul.f32 %v1937, %v1937
  %v1940 = vsel %vm629, %v1938, 0.0
  %v1941 = vsel %vm629, %v1939, 0.0
  %v1942 = vadd.f32 %v1940, %v1941
  %1943 = vadd.xlane.f32.xlu0 %v1942
  %v1944 = vpop.xlane.xlu0 %1943
  %v1945 = vadd.f32 %v1935, %v1944
  %v1946 = vmul.f32 %v1945, 0.001953125
  %v1947 = vadd.f32 %v1946, 1e-05
  %v1948 = vrsqrt.pop %v1947
  %v1949 = vld [vmem:[%s5] sm:$0xf]
  %v1950 = vmul.f32 %v1948, %v1949
  %v1951 = vld [vmem:[%s6] sm:$0xf]
  %v1952 = vmul.f32 %v1925, %v1950
  %v1953 = vsub.f32 %v1951, %v1952
  %v1954 = vld [vmem:[%s1] sm:$0xff]
  %1956 = vset.pattern.permute.xlu0 0
  %1957 = vperm.xlu0 %1956, %v1950
  %v1958 = vpop.permute.xlu0 %1957
  %v1960 = vmul.f32 %v1579, %v1958
  %v1961 = vmul.f32 %v1580, %v1958
  %1963 = vset.pattern.permute.xlu0 0
  %1964 = vperm.xlu0 %1963, %v1953
  %v1965 = vpop.permute.xlu0 %1964
  %v1967 = vadd.f32 %v1960, %v1965
  %v1968 = vadd.f32 %v1961, %v1965
  %v1970 = vcombine.high %v1954, %v1954
  %v1974 = vrot.slane %v1967, 4
  %v1975 = vrot.slane %v1968, 4
  %v1978 = vsel %vm629, %v1954, %v1974
  %v1979 = vsel %vm629, %v1970, %v1975
  %1980 = vst [vmem:[%s7] sm:$0xff] %v1978
  %1981 = vst [vmem:[%s7 + $0x8] sm:$0xff] %v1979
  %s1982 = scalar_lea.vmem %s1, 8
  %v1983 = vld [vmem:[%s1982] sm:$0xff]
  %v1984 = vmul.f32 %v1911, %v1958
  %v1985 = vmul.f32 %v1912, %v1958
  %v1986 = vadd.f32 %v1984, %v1965
  %v1987 = vadd.f32 %v1985, %v1965
  %v1989 = vcombine.high %v1983, %v1983
  %v1993 = vrot.slane %v1986, 4
  %v1994 = vrot.slane %v1987, 4
  %v1997 = vsel %vm629, %v1983, %v1993
  %v1998 = vsel %vm629, %v1989, %v1994
  %s1999 = scalar_lea.vmem %s7, 16
  %2000 = vst [vmem:[%s1999] sm:$0xff] %v1997
  %2001 = vst [vmem:[%s1999 + $0x8] sm:$0xff] %v1998
  // Predicated region
  $region30: #{seg_v3_block_innermost.1} parent=0 // pred_check
    _
  $region31: #{seg_v3_block_innermost.1} parent=0 // pred_check_branch
    %2003 = sbr.rel (0) target = $region33
  $region32: #{seg_v3_block_innermost.1} parent=0 // pred_region
    _
  $region33: #{seg_v3_block_innermost.1} parent=0 // pred_fallthru
    _
  // Predicated region
  $region34: #{seg_v3_block_innermost.1} parent=0 // pred_check
    _
  $region35: #{seg_v3_block_innermost.1} parent=0 // pred_check_branch
    %2005 = sbr.rel (0) target = $region37
  $region36: #{seg_v3_block_innermost.1} parent=0 // pred_region
    _
  $region37: #{seg_v3_block_innermost.1} parent=0 // pred_fallthru
    _

</llo_original>
